<compile_context>
chip_gen: v7x
topology: tpu7x:2x2x1
jax: 0.10.0
libtpu: 0.0.40
codegen_flags: <defaults>
</compile_context>

<pallas_src>
import functools

import jax
import jax.numpy as jnp
from jax import lax
from jax.experimental import pallas as pl
from jax.experimental.pallas import tpu as pltpu


def _resblock_kernel(x_ref, mask_ref, w1_ref, b1_ref, w2_ref, b2_ref, o_ref, *,
                     width):
    """Nb batch images per grid step.

    x_ref   : (Nb, C, H*W) input images, channels on sublanes, flat spatial on lanes
    mask_ref: (9, H*W)     compute-dtype {0,1} per-tap masks killing roll wraparound
    w1_ref  : (3, C, 3*C)  conv1 weights, per-kh lane-dense slabs (kw-major, cin-minor)
    b1_ref  : (C, 1)       conv1 bias (f32)
    w2_ref  : (3, C, 3*C)  conv2 weights
    b2_ref  : (C, 1)       conv2 bias (f32)
    o_ref   : (Nb, C, H*W) output (lane-dense store)
    """
    nb, _, HW = x_ref.shape
    W = width

    # Loop-invariant loads, hoisted once for the whole unrolled image loop.
    masks = mask_ref[...]                               # (9, HW) compute dtype
    mrows = [masks[t:t + 1, :] for t in range(9)]       # (1, HW) each
    w1h = [w1_ref[kh] for kh in range(3)]               # 3 x (C, 3C)
    w2h = [w2_ref[kh] for kh in range(3)]
    b1 = b1_ref[...]                                    # (C, 1) f32
    b2 = b2_ref[...]

    def conv3x3(xc, wh, b):
        # xc: (C, HW) in the matmul dtype.  Returns (C, HW) f32.
        # Per-kh K=3C fusion: 3 matmuls + 2 f32 adds per conv (no 9C slab).
        # (On v7x one could split further into 9 MRB-accumulating matmuls.)
        acc = None
        for kh in range(3):
            taps = []
            for kw in range(3):
                s = (kh - 1) * W + (kw - 1)              # flat offset of this tap
                # tap[p] = xc[p + s] via a lane roll (XLU); wraparound elements are
                # exactly the out-of-image reads and get zeroed by the tap mask.
                t = xc if s == 0 else pltpu.roll(xc, (-s) % HW, axis=1)
                if (kh, kw) != (1, 1):
                    t = t * mrows[kh * 3 + kw]
                taps.append(t)
            slab = jnp.concatenate(taps, axis=0)         # (3C, HW) compute dtype
            part = jnp.dot(wh[kh], slab, preferred_element_type=jnp.float32)
            acc = part if acc is None else acc + part
        return acc + b                                   # bias (C,1) broadcast, f32

    for n in range(nb):                                  # static unroll over batch block
        xi = x_ref[n]                                    # (C, HW) f32 residual source
        xc = xi.astype(w1h[0].dtype)                     # single cast to matmul dtype
        h = jnp.maximum(conv3x3(xc, w1h, b1), 0.0)       # conv1 + ReLU (f32)
        h = conv3x3(h.astype(w2h[0].dtype), w2h, b2)     # conv2
        o_ref[n] = (xi + h).astype(o_ref.dtype)          # exact f32 residual add


def _pick_batch_block(n, c, hw):
    """Largest divisor of n (<= 8) keeping the f32 input block under ~2 MiB."""
    cap = max(1, min(8, (2 * 1024 * 1024) // max(1, c * hw * 4)))
    nb = 1
    for d in range(1, min(n, cap) + 1):
        if n % d == 0:
            nb = d
    return nb


@functools.partial(jax.jit, static_argnames=("compute_dtype",))
def resblock_pallas(x_nchw, w1, b1, w2, b2, compute_dtype=jnp.bfloat16):
    """x_nchw: (N, C, H, W) f32.  Weights in PyTorch layout (Cout, Cin, kh, kw)."""
    N, C, H, W = x_nchw.shape
    HW = H * W

    # NCHW -> (N, C, H*W): pure metadata reshape (no transpose, no pad).
    x_flat = x_nchw.reshape(N, C, HW)

    # (Cout, Cin, kh, kw) -> (kh, Cout, kw*Cin) per-kh lane-dense slabs, cast once
    # to the MXU compute dtype.
    w1m = jnp.transpose(w1, (2, 0, 3, 1)).reshape(3, C, 3 * C).astype(compute_dtype)
    w2m = jnp.transpose(w2, (2, 0, 3, 1)).reshape(3, C, 3 * C).astype(compute_dtype)
    b1c = b1.reshape(C, 1).astype(jnp.float32)
    b2c = b2.reshape(C, 1).astype(jnp.float32)

    # Per-tap {0,1} masks (9, HW) in compute dtype: zero wherever the circular
    # lane roll would read outside the image (top/bottom rows for kh=0/2,
    # left/right columns for kw=0/2; corner taps combine both).
    p = jnp.arange(HW, dtype=jnp.int32)
    col, row = p % W, p // W
    kh_ok = {0: row != 0, 2: row != (H - 1)}
    kw_ok = {0: col != 0, 2: col != (W - 1)}
    mask_rows = []
    for kh in range(3):
        for kw in range(3):
            m = jnp.ones((HW,), jnp.bool_)
            if kh in kh_ok:
                m = m & kh_ok[kh]
            if kw in kw_ok:
                m = m & kw_ok[kw]
            mask_rows.append(m)
    masks = jnp.stack(mask_rows).astype(compute_dtype)   # (9, HW)

    nb = _pick_batch_block(N, C, HW)
    block_bytes = nb * C * HW * 4
    vmem_limit = int(min(64 * 1024 * 1024, max(32 * 1024 * 1024, 8 * block_bytes)))

    kernel = functools.partial(_resblock_kernel, width=W)

    out_flat = pl.pallas_call(
        kernel,
        out_shape=jax.ShapeDtypeStruct((N, C, HW), x_nchw.dtype),
        grid_spec=pltpu.PrefetchScalarGridSpec(
            num_scalar_prefetch=0,
            grid=(N // nb,),
            in_specs=[
                pl.BlockSpec((nb, C, HW), lambda n: (n, 0, 0)),
                pl.BlockSpec((9, HW), lambda n: (0, 0)),
                pl.BlockSpec((3, C, 3 * C), lambda n: (0, 0, 0)),
                pl.BlockSpec((C, 1), lambda n: (0, 0)),
                pl.BlockSpec((3, C, 3 * C), lambda n: (0, 0, 0)),
                pl.BlockSpec((C, 1), lambda n: (0, 0)),
            ],
            out_specs=pl.BlockSpec((nb, C, HW), lambda n: (n, 0, 0)),
        ),
        compiler_params=pltpu.CompilerParams(
            dimension_semantics=("parallel",),
            vmem_limit_bytes=vmem_limit),
    )(x_flat, masks, w1m, b1c, w2m, b2c)

    # (N, C, H*W) -> NCHW: metadata reshape only.
    return out_flat.reshape(N, C, H, W)


def _reference(x_nchw, w1, b1, w2, b2):
    """Pure-JAX reference mirroring the PyTorch ResBlock forward (mode='CRC')."""
    dn = lax.conv_dimension_numbers(x_nchw.shape, w1.shape,
                                    ("NCHW", "OIHW", "NCHW"))
    h = lax.conv_general_dilated(x_nchw, w1, (1, 1), ((1, 1), (1, 1)),
                                 dimension_numbers=dn)
    h = h + b1.reshape(1, -1, 1, 1)
    h = jnp.maximum(h, 0.0)
    h = lax.conv_general_dilated(h, w2, (1, 1), ((1, 1), (1, 1)),
                                 dimension_numbers=dn)
    h = h + b2.reshape(1, -1, 1, 1)
    return x_nchw + h


if __name__ == "__main__":
    def run_case(N, C, H, W, dtype, atol, rtol, tag):
        key = jax.random.PRNGKey(0)
        kx, kw1, kb1, kw2, kb2 = jax.random.split(key, 5)
        x = jax.random.normal(kx, (N, C, H, W), dtype=jnp.float32)
        w1 = 0.1 * jax.random.normal(kw1, (C, C, 3, 3), dtype=jnp.float32)
        b1 = 0.1 * jax.random.normal(kb1, (C,), dtype=jnp.float32)
        w2 = 0.1 * jax.random.normal(kw2, (C, C, 3, 3), dtype=jnp.float32)
        b2 = 0.1 * jax.random.normal(kb2, (C,), dtype=jnp.float32)
        ref = _reference(x, w1, b1, w2, b2)
        out = jax.block_until_ready(
            resblock_pallas(x, w1, b1, w2, b2, compute_dtype=dtype))
        assert out.shape == (N, C, H, W), f"{tag}: bad shape {out.shape}"
        assert jnp.allclose(out, ref, atol=atol, rtol=rtol), f"{tag}: mismatch"

    # Primary small case: f32 exactness check of the roll/mask tap structure,
    # then the default bf16 MXU path (f32 accumulation, f32 bias/ReLU/residual).
    run_case(2, 4, 16, 16, jnp.float32, 1e-4, 1e-4, "f32 16x16")
    run_case(2, 4, 16, 16, jnp.bfloat16, 3e-2, 3e-2, "bf16 16x16")
    # Non-square shape (H!=W, odd C, Nb=3) exercising the top/bottom wrap masks
    # independently of the left/right ones; HW kept a multiple of 128.
    run_case(3, 5, 8, 32, jnp.float32, 1e-4, 1e-4, "f32 8x32")

    print("KERNEL_OK")
</pallas_src>

<mosaic_0001>
module attributes {stable_mosaic.version = 11 : i64} {
  func.func @_resblock_kernel(%arg0: i32, %arg1: memref<2x4x256xf32, #tpu.memory_space<vmem>>, %arg2: memref<9x256xf32, #tpu.memory_space<vmem>>, %arg3: memref<3x4x12xf32, #tpu.memory_space<vmem>>, %arg4: memref<4x1xf32, #tpu.memory_space<vmem>>, %arg5: memref<3x4x12xf32, #tpu.memory_space<vmem>>, %arg6: memref<4x1xf32, #tpu.memory_space<vmem>>, %arg7: memref<2x4x256xf32, #tpu.memory_space<vmem>>) attributes {dimension_semantics = [#tpu.dimension_semantics<parallel>], iteration_bounds = array<i64: 1>, scalar_prefetch = 0 : i64, scratch_operands = 0 : i64, tpu.core_type = #tpu.core_type<tc>, window_params = [{transform_indices = @transform_0, window_bounds = array<i64: 2, 4, 256>}, {pipeline_mode = #tpu.pipeline_mode<synchronous>, transform_indices = @transform_1, window_bounds = array<i64: 9, 256>}, {pipeline_mode = #tpu.pipeline_mode<synchronous>, transform_indices = @transform_2, window_bounds = array<i64: 3, 4, 12>}, {pipeline_mode = #tpu.pipeline_mode<synchronous>, transform_indices = @transform_3, window_bounds = array<i64: 4, 1>}, {pipeline_mode = #tpu.pipeline_mode<synchronous>, transform_indices = @transform_4, window_bounds = array<i64: 3, 4, 12>}, {pipeline_mode = #tpu.pipeline_mode<synchronous>, transform_indices = @transform_5, window_bounds = array<i64: 4, 1>}, {transform_indices = @transform_6, window_bounds = array<i64: 2, 4, 256>}]} {
    %c0 = arith.constant 0 : index
    %c0_0 = arith.constant 0 : index
    %0 = vector.load %arg2[%c0, %c0_0] : memref<9x256xf32, #tpu.memory_space<vmem>>, vector<9x256xf32>
    %1 = vector.extract_strided_slice %0 {offsets = [0, 0], sizes = [1, 256], strides = [1, 1]} : vector<9x256xf32> to vector<1x256xf32>
    %2 = vector.extract_strided_slice %0 {offsets = [1, 0], sizes = [1, 256], strides = [1, 1]} : vector<9x256xf32> to vector<1x256xf32>
    %3 = vector.extract_strided_slice %0 {offsets = [2, 0], sizes = [1, 256], strides = [1, 1]} : vector<9x256xf32> to vector<1x256xf32>
    %4 = vector.extract_strided_slice %0 {offsets = [3, 0], sizes = [1, 256], strides = [1, 1]} : vector<9x256xf32> to vector<1x256xf32>
    %5 = vector.extract_strided_slice %0 {offsets = [5, 0], sizes = [1, 256], strides = [1, 1]} : vector<9x256xf32> to vector<1x256xf32>
    %6 = vector.extract_strided_slice %0 {offsets = [6, 0], sizes = [1, 256], strides = [1, 1]} : vector<9x256xf32> to vector<1x256xf32>
    %7 = vector.extract_strided_slice %0 {offsets = [7, 0], sizes = [1, 256], strides = [1, 1]} : vector<9x256xf32> to vector<1x256xf32>
    %8 = vector.extract_strided_slice %0 {offsets = [8, 0], sizes = [1, 256], strides = [1, 1]} : vector<9x256xf32> to vector<1x256xf32>
    %c0_1 = arith.constant 0 : index
    %c0_2 = arith.constant 0 : index
    %c0_3 = arith.constant 0 : index
    %9 = vector.load %arg3[%c0_1, %c0_2, %c0_3] : memref<3x4x12xf32, #tpu.memory_space<vmem>>, vector<1x4x12xf32>
    %10 = vector.shape_cast %9 : vector<1x4x12xf32> to vector<4x12xf32>
    %c1 = arith.constant 1 : index
    %c0_4 = arith.constant 0 : index
    %c0_5 = arith.constant 0 : index
    %11 = vector.load %arg3[%c1, %c0_4, %c0_5] : memref<3x4x12xf32, #tpu.memory_space<vmem>>, vector<1x4x12xf32>
    %12 = vector.shape_cast %11 : vector<1x4x12xf32> to vector<4x12xf32>
    %c2 = arith.constant 2 : index
    %c0_6 = arith.constant 0 : index
    %c0_7 = arith.constant 0 : index
    %13 = vector.load %arg3[%c2, %c0_6, %c0_7] : memref<3x4x12xf32, #tpu.memory_space<vmem>>, vector<1x4x12xf32>
    %14 = vector.shape_cast %13 : vector<1x4x12xf32> to vector<4x12xf32>
    %c0_8 = arith.constant 0 : index
    %c0_9 = arith.constant 0 : index
    %c0_10 = arith.constant 0 : index
    %15 = vector.load %arg5[%c0_8, %c0_9, %c0_10] : memref<3x4x12xf32, #tpu.memory_space<vmem>>, vector<1x4x12xf32>
    %16 = vector.shape_cast %15 : vector<1x4x12xf32> to vector<4x12xf32>
    %c1_11 = arith.constant 1 : index
    %c0_12 = arith.constant 0 : index
    %c0_13 = arith.constant 0 : index
    %17 = vector.load %arg5[%c1_11, %c0_12, %c0_13] : memref<3x4x12xf32, #tpu.memory_space<vmem>>, vector<1x4x12xf32>
    %18 = vector.shape_cast %17 : vector<1x4x12xf32> to vector<4x12xf32>
    %c2_14 = arith.constant 2 : index
    %c0_15 = arith.constant 0 : index
    %c0_16 = arith.constant 0 : index
    %19 = vector.load %arg5[%c2_14, %c0_15, %c0_16] : memref<3x4x12xf32, #tpu.memory_space<vmem>>, vector<1x4x12xf32>
    %20 = vector.shape_cast %19 : vector<1x4x12xf32> to vector<4x12xf32>
    %c0_17 = arith.constant 0 : index
    %c0_18 = arith.constant 0 : index
    %21 = vector.load %arg4[%c0_17, %c0_18] : memref<4x1xf32, #tpu.memory_space<vmem>>, vector<4x1xf32>
    %c0_19 = arith.constant 0 : index
    %c0_20 = arith.constant 0 : index
    %22 = vector.load %arg6[%c0_19, %c0_20] : memref<4x1xf32, #tpu.memory_space<vmem>>, vector<4x1xf32>
    %c0_21 = arith.constant 0 : index
    %c0_22 = arith.constant 0 : index
    %c0_23 = arith.constant 0 : index
    %23 = vector.load %arg1[%c0_21, %c0_22, %c0_23] : memref<2x4x256xf32, #tpu.memory_space<vmem>>, vector<1x4x256xf32>
    %24 = vector.shape_cast %23 : vector<1x4x256xf32> to vector<4x256xf32>
    %c17_i32 = arith.constant 17 : i32
    %25 = tpu.dynamic_rotate %24 by %c17_i32 dim 1 : vector<4x256xf32>, i32 -> vector<4x256xf32>
    %26 = vector.broadcast %1 : vector<1x256xf32> to vector<4x256xf32>
    %27 = arith.mulf %25, %26 : vector<4x256xf32>
    %c16_i32 = arith.constant 16 : i32
    %28 = tpu.dynamic_rotate %24 by %c16_i32 dim 1 : vector<4x256xf32>, i32 -> vector<4x256xf32>
    %29 = vector.broadcast %2 : vector<1x256xf32> to vector<4x256xf32>
    %30 = arith.mulf %28, %29 : vector<4x256xf32>
    %c15_i32 = arith.constant 15 : i32
    %31 = tpu.dynamic_rotate %24 by %c15_i32 dim 1 : vector<4x256xf32>, i32 -> vector<4x256xf32>
    %32 = vector.broadcast %3 : vector<1x256xf32> to vector<4x256xf32>
    %33 = arith.mulf %31, %32 : vector<4x256xf32>
    %34 = tpu.concatenate %27, %30, %33 in 0 : vector<4x256xf32>, vector<4x256xf32>, vector<4x256xf32> -> vector<12x256xf32>
    %cst = arith.constant dense<0.000000e+00> : vector<4x256xf32>
    %35 = tpu.matmul %10, %34, %cst {dimension_numbers = #tpu.dot_dimension_numbers<[1], [0], [0], [1], [0, 0, 1, 1], [], []>} : vector<4x12xf32>, vector<12x256xf32>, vector<4x256xf32> -> vector<4x256xf32>
    %c1_i32 = arith.constant 1 : i32
    %36 = tpu.dynamic_rotate %24 by %c1_i32 dim 1 : vector<4x256xf32>, i32 -> vector<4x256xf32>
    %37 = vector.broadcast %4 : vector<1x256xf32> to vector<4x256xf32>
    %38 = arith.mulf %36, %37 : vector<4x256xf32>
    %c255_i32 = arith.constant 255 : i32
    %39 = tpu.dynamic_rotate %24 by %c255_i32 dim 1 : vector<4x256xf32>, i32 -> vector<4x256xf32>
    %40 = vector.broadcast %5 : vector<1x256xf32> to vector<4x256xf32>
    %41 = arith.mulf %39, %40 : vector<4x256xf32>
    %42 = tpu.concatenate %38, %24, %41 in 0 : vector<4x256xf32>, vector<4x256xf32>, vector<4x256xf32> -> vector<12x256xf32>
    %cst_24 = arith.constant dense<0.000000e+00> : vector<4x256xf32>
    %43 = tpu.matmul %12, %42, %cst_24 {dimension_numbers = #tpu.dot_dimension_numbers<[1], [0], [0], [1], [0, 0, 1, 1], [], []>} : vector<4x12xf32>, vector<12x256xf32>, vector<4x256xf32> -> vector<4x256xf32>
    %44 = arith.addf %35, %43 : vector<4x256xf32>
    %c241_i32 = arith.constant 241 : i32
    %45 = tpu.dynamic_rotate %24 by %c241_i32 dim 1 : vector<4x256xf32>, i32 -> vector<4x256xf32>
    %46 = vector.broadcast %6 : vector<1x256xf32> to vector<4x256xf32>
    %47 = arith.mulf %45, %46 : vector<4x256xf32>
    %c240_i32 = arith.constant 240 : i32
    %48 = tpu.dynamic_rotate %24 by %c240_i32 dim 1 : vector<4x256xf32>, i32 -> vector<4x256xf32>
    %49 = vector.broadcast %7 : vector<1x256xf32> to vector<4x256xf32>
    %50 = arith.mulf %48, %49 : vector<4x256xf32>
    %c239_i32 = arith.constant 239 : i32
    %51 = tpu.dynamic_rotate %24 by %c239_i32 dim 1 : vector<4x256xf32>, i32 -> vector<4x256xf32>
    %52 = vector.broadcast %8 : vector<1x256xf32> to vector<4x256xf32>
    %53 = arith.mulf %51, %52 : vector<4x256xf32>
    %54 = tpu.concatenate %47, %50, %53 in 0 : vector<4x256xf32>, vector<4x256xf32>, vector<4x256xf32> -> vector<12x256xf32>
    %cst_25 = arith.constant dense<0.000000e+00> : vector<4x256xf32>
    %55 = tpu.matmul %14, %54, %cst_25 {dimension_numbers = #tpu.dot_dimension_numbers<[1], [0], [0], [1], [0, 0, 1, 1], [], []>} : vector<4x12xf32>, vector<12x256xf32>, vector<4x256xf32> -> vector<4x256xf32>
    %56 = arith.addf %44, %55 : vector<4x256xf32>
    %57 = vector.broadcast %21 : vector<4x1xf32> to vector<4x256xf32>
    %58 = arith.addf %56, %57 : vector<4x256xf32>
    %cst_26 = arith.constant 0.000000e+00 : f32
    %59 = vector.broadcast %cst_26 : f32 to vector<4x256xf32>
    %60 = arith.maximumf %58, %59 : vector<4x256xf32>
    %c17_i32_27 = arith.constant 17 : i32
    %61 = tpu.dynamic_rotate %60 by %c17_i32_27 dim 1 : vector<4x256xf32>, i32 -> vector<4x256xf32>
    %62 = vector.broadcast %1 : vector<1x256xf32> to vector<4x256xf32>
    %63 = arith.mulf %61, %62 : vector<4x256xf32>
    %c16_i32_28 = arith.constant 16 : i32
    %64 = tpu.dynamic_rotate %60 by %c16_i32_28 dim 1 : vector<4x256xf32>, i32 -> vector<4x256xf32>
    %65 = vector.broadcast %2 : vector<1x256xf32> to vector<4x256xf32>
    %66 = arith.mulf %64, %65 : vector<4x256xf32>
    %c15_i32_29 = arith.constant 15 : i32
    %67 = tpu.dynamic_rotate %60 by %c15_i32_29 dim 1 : vector<4x256xf32>, i32 -> vector<4x256xf32>
    %68 = vector.broadcast %3 : vector<1x256xf32> to vector<4x256xf32>
    %69 = arith.mulf %67, %68 : vector<4x256xf32>
    %70 = tpu.concatenate %63, %66, %69 in 0 : vector<4x256xf32>, vector<4x256xf32>, vector<4x256xf32> -> vector<12x256xf32>
    %cst_30 = arith.constant dense<0.000000e+00> : vector<4x256xf32>
    %71 = tpu.matmul %16, %70, %cst_30 {dimension_numbers = #tpu.dot_dimension_numbers<[1], [0], [0], [1], [0, 0, 1, 1], [], []>} : vector<4x12xf32>, vector<12x256xf32>, vector<4x256xf32> -> vector<4x256xf32>
    %c1_i32_31 = arith.constant 1 : i32
    %72 = tpu.dynamic_rotate %60 by %c1_i32_31 dim 1 : vector<4x256xf32>, i32 -> vector<4x256xf32>
    %73 = vector.broadcast %4 : vector<1x256xf32> to vector<4x256xf32>
    %74 = arith.mulf %72, %73 : vector<4x256xf32>
    %c255_i32_32 = arith.constant 255 : i32
    %75 = tpu.dynamic_rotate %60 by %c255_i32_32 dim 1 : vector<4x256xf32>, i32 -> vector<4x256xf32>
    %76 = vector.broadcast %5 : vector<1x256xf32> to vector<4x256xf32>
    %77 = arith.mulf %75, %76 : vector<4x256xf32>
    %78 = tpu.concatenate %74, %60, %77 in 0 : vector<4x256xf32>, vector<4x256xf32>, vector<4x256xf32> -> vector<12x256xf32>
    %cst_33 = arith.constant dense<0.000000e+00> : vector<4x256xf32>
    %79 = tpu.matmul %18, %78, %cst_33 {dimension_numbers = #tpu.dot_dimension_numbers<[1], [0], [0], [1], [0, 0, 1, 1], [], []>} : vector<4x12xf32>, vector<12x256xf32>, vector<4x256xf32> -> vector<4x256xf32>
    %80 = arith.addf %71, %79 : vector<4x256xf32>
    %c241_i32_34 = arith.constant 241 : i32
    %81 = tpu.dynamic_rotate %60 by %c241_i32_34 dim 1 : vector<4x256xf32>, i32 -> vector<4x256xf32>
    %82 = vector.broadcast %6 : vector<1x256xf32> to vector<4x256xf32>
    %83 = arith.mulf %81, %82 : vector<4x256xf32>
    %c240_i32_35 = arith.constant 240 : i32
    %84 = tpu.dynamic_rotate %60 by %c240_i32_35 dim 1 : vector<4x256xf32>, i32 -> vector<4x256xf32>
    %85 = vector.broadcast %7 : vector<1x256xf32> to vector<4x256xf32>
    %86 = arith.mulf %84, %85 : vector<4x256xf32>
    %c239_i32_36 = arith.constant 239 : i32
    %87 = tpu.dynamic_rotate %60 by %c239_i32_36 dim 1 : vector<4x256xf32>, i32 -> vector<4x256xf32>
    %88 = vector.broadcast %8 : vector<1x256xf32> to vector<4x256xf32>
    %89 = arith.mulf %87, %88 : vector<4x256xf32>
    %90 = tpu.concatenate %83, %86, %89 in 0 : vector<4x256xf32>, vector<4x256xf32>, vector<4x256xf32> -> vector<12x256xf32>
    %cst_37 = arith.constant dense<0.000000e+00> : vector<4x256xf32>
    %91 = tpu.matmul %20, %90, %cst_37 {dimension_numbers = #tpu.dot_dimension_numbers<[1], [0], [0], [1], [0, 0, 1, 1], [], []>} : vector<4x12xf32>, vector<12x256xf32>, vector<4x256xf32> -> vector<4x256xf32>
    %92 = arith.addf %80, %91 : vector<4x256xf32>
    %93 = vector.broadcast %22 : vector<4x1xf32> to vector<4x256xf32>
    %94 = arith.addf %92, %93 : vector<4x256xf32>
    %95 = arith.addf %24, %94 : vector<4x256xf32>
    %c0_38 = arith.constant 0 : index
    %c0_39 = arith.constant 0 : index
    %c0_40 = arith.constant 0 : index
    %96 = vector.load %arg7[%c0_38, %c0_39, %c0_40] : memref<2x4x256xf32, #tpu.memory_space<vmem>>, vector<1x4x256xf32>
    %97 = vector.shape_cast %96 : vector<1x4x256xf32> to vector<4x256xf32>
    %98 = vector.shape_cast %95 : vector<4x256xf32> to vector<1x4x256xf32>
    tpu.vector_store %arg7[%c0_38, %c0_39, %c0_40], %98 {strides = array<i32>} : memref<2x4x256xf32, #tpu.memory_space<vmem>>, vector<1x4x256xf32>,
    %c1_41 = arith.constant 1 : index
    %c0_42 = arith.constant 0 : index
    %c0_43 = arith.constant 0 : index
    %99 = vector.load %arg1[%c1_41, %c0_42, %c0_43] : memref<2x4x256xf32, #tpu.memory_space<vmem>>, vector<1x4x256xf32>
    %100 = vector.shape_cast %99 : vector<1x4x256xf32> to vector<4x256xf32>
    %c17_i32_44 = arith.constant 17 : i32
    %101 = tpu.dynamic_rotate %100 by %c17_i32_44 dim 1 : vector<4x256xf32>, i32 -> vector<4x256xf32>
    %102 = vector.broadcast %1 : vector<1x256xf32> to vector<4x256xf32>
    %103 = arith.mulf %101, %102 : vector<4x256xf32>
    %c16_i32_45 = arith.constant 16 : i32
    %104 = tpu.dynamic_rotate %100 by %c16_i32_45 dim 1 : vector<4x256xf32>, i32 -> vector<4x256xf32>
    %105 = vector.broadcast %2 : vector<1x256xf32> to vector<4x256xf32>
    %106 = arith.mulf %104, %105 : vector<4x256xf32>
    %c15_i32_46 = arith.constant 15 : i32
    %107 = tpu.dynamic_rotate %100 by %c15_i32_46 dim 1 : vector<4x256xf32>, i32 -> vector<4x256xf32>
    %108 = vector.broadcast %3 : vector<1x256xf32> to vector<4x256xf32>
    %109 = arith.mulf %107, %108 : vector<4x256xf32>
    %110 = tpu.concatenate %103, %106, %109 in 0 : vector<4x256xf32>, vector<4x256xf32>, vector<4x256xf32> -> vector<12x256xf32>
    %cst_47 = arith.constant dense<0.000000e+00> : vector<4x256xf32>
    %111 = tpu.matmul %10, %110, %cst_47 {dimension_numbers = #tpu.dot_dimension_numbers<[1], [0], [0], [1], [0, 0, 1, 1], [], []>} : vector<4x12xf32>, vector<12x256xf32>, vector<4x256xf32> -> vector<4x256xf32>
    %c1_i32_48 = arith.constant 1 : i32
    %112 = tpu.dynamic_rotate %100 by %c1_i32_48 dim 1 : vector<4x256xf32>, i32 -> vector<4x256xf32>
    %113 = vector.broadcast %4 : vector<1x256xf32> to vector<4x256xf32>
    %114 = arith.mulf %112, %113 : vector<4x256xf32>
    %c255_i32_49 = arith.constant 255 : i32
    %115 = tpu.dynamic_rotate %100 by %c255_i32_49 dim 1 : vector<4x256xf32>, i32 -> vector<4x256xf32>
    %116 = vector.broadcast %5 : vector<1x256xf32> to vector<4x256xf32>
    %117 = arith.mulf %115, %116 : vector<4x256xf32>
    %118 = tpu.concatenate %114, %100, %117 in 0 : vector<4x256xf32>, vector<4x256xf32>, vector<4x256xf32> -> vector<12x256xf32>
    %cst_50 = arith.constant dense<0.000000e+00> : vector<4x256xf32>
    %119 = tpu.matmul %12, %118, %cst_50 {dimension_numbers = #tpu.dot_dimension_numbers<[1], [0], [0], [1], [0, 0, 1, 1], [], []>} : vector<4x12xf32>, vector<12x256xf32>, vector<4x256xf32> -> vector<4x256xf32>
    %120 = arith.addf %111, %119 : vector<4x256xf32>
    %c241_i32_51 = arith.constant 241 : i32
    %121 = tpu.dynamic_rotate %100 by %c241_i32_51 dim 1 : vector<4x256xf32>, i32 -> vector<4x256xf32>
    %122 = vector.broadcast %6 : vector<1x256xf32> to vector<4x256xf32>
    %123 = arith.mulf %121, %122 : vector<4x256xf32>
    %c240_i32_52 = arith.constant 240 : i32
    %124 = tpu.dynamic_rotate %100 by %c240_i32_52 dim 1 : vector<4x256xf32>, i32 -> vector<4x256xf32>
    %125 = vector.broadcast %7 : vector<1x256xf32> to vector<4x256xf32>
    %126 = arith.mulf %124, %125 : vector<4x256xf32>
    %c239_i32_53 = arith.constant 239 : i32
    %127 = tpu.dynamic_rotate %100 by %c239_i32_53 dim 1 : vector<4x256xf32>, i32 -> vector<4x256xf32>
    %128 = vector.broadcast %8 : vector<1x256xf32> to vector<4x256xf32>
    %129 = arith.mulf %127, %128 : vector<4x256xf32>
    %130 = tpu.concatenate %123, %126, %129 in 0 : vector<4x256xf32>, vector<4x256xf32>, vector<4x256xf32> -> vector<12x256xf32>
    %cst_54 = arith.constant dense<0.000000e+00> : vector<4x256xf32>
    %131 = tpu.matmul %14, %130, %cst_54 {dimension_numbers = #tpu.dot_dimension_numbers<[1], [0], [0], [1], [0, 0, 1, 1], [], []>} : vector<4x12xf32>, vector<12x256xf32>, vector<4x256xf32> -> vector<4x256xf32>
    %132 = arith.addf %120, %131 : vector<4x256xf32>
    %133 = vector.broadcast %21 : vector<4x1xf32> to vector<4x256xf32>
    %134 = arith.addf %132, %133 : vector<4x256xf32>
    %cst_55 = arith.constant 0.000000e+00 : f32
    %135 = vector.broadcast %cst_55 : f32 to vector<4x256xf32>
    %136 = arith.maximumf %134, %135 : vector<4x256xf32>
    %c17_i32_56 = arith.constant 17 : i32
    %137 = tpu.dynamic_rotate %136 by %c17_i32_56 dim 1 : vector<4x256xf32>, i32 -> vector<4x256xf32>
    %138 = vector.broadcast %1 : vector<1x256xf32> to vector<4x256xf32>
    %139 = arith.mulf %137, %138 : vector<4x256xf32>
    %c16_i32_57 = arith.constant 16 : i32
    %140 = tpu.dynamic_rotate %136 by %c16_i32_57 dim 1 : vector<4x256xf32>, i32 -> vector<4x256xf32>
    %141 = vector.broadcast %2 : vector<1x256xf32> to vector<4x256xf32>
    %142 = arith.mulf %140, %141 : vector<4x256xf32>
    %c15_i32_58 = arith.constant 15 : i32
    %143 = tpu.dynamic_rotate %136 by %c15_i32_58 dim 1 : vector<4x256xf32>, i32 -> vector<4x256xf32>
    %144 = vector.broadcast %3 : vector<1x256xf32> to vector<4x256xf32>
    %145 = arith.mulf %143, %144 : vector<4x256xf32>
    %146 = tpu.concatenate %139, %142, %145 in 0 : vector<4x256xf32>, vector<4x256xf32>, vector<4x256xf32> -> vector<12x256xf32>
    %cst_59 = arith.constant dense<0.000000e+00> : vector<4x256xf32>
    %147 = tpu.matmul %16, %146, %cst_59 {dimension_numbers = #tpu.dot_dimension_numbers<[1], [0], [0], [1], [0, 0, 1, 1], [], []>} : vector<4x12xf32>, vector<12x256xf32>, vector<4x256xf32> -> vector<4x256xf32>
    %c1_i32_60 = arith.constant 1 : i32
    %148 = tpu.dynamic_rotate %136 by %c1_i32_60 dim 1 : vector<4x256xf32>, i32 -> vector<4x256xf32>
    %149 = vector.broadcast %4 : vector<1x256xf32> to vector<4x256xf32>
    %150 = arith.mulf %148, %149 : vector<4x256xf32>
    %c255_i32_61 = arith.constant 255 : i32
    %151 = tpu.dynamic_rotate %136 by %c255_i32_61 dim 1 : vector<4x256xf32>, i32 -> vector<4x256xf32>
    %152 = vector.broadcast %5 : vector<1x256xf32> to vector<4x256xf32>
    %153 = arith.mulf %151, %152 : vector<4x256xf32>
    %154 = tpu.concatenate %150, %136, %153 in 0 : vector<4x256xf32>, vector<4x256xf32>, vector<4x256xf32> -> vector<12x256xf32>
    %cst_62 = arith.constant dense<0.000000e+00> : vector<4x256xf32>
    %155 = tpu.matmul %18, %154, %cst_62 {dimension_numbers = #tpu.dot_dimension_numbers<[1], [0], [0], [1], [0, 0, 1, 1], [], []>} : vector<4x12xf32>, vector<12x256xf32>, vector<4x256xf32> -> vector<4x256xf32>
    %156 = arith.addf %147, %155 : vector<4x256xf32>
    %c241_i32_63 = arith.constant 241 : i32
    %157 = tpu.dynamic_rotate %136 by %c241_i32_63 dim 1 : vector<4x256xf32>, i32 -> vector<4x256xf32>
    %158 = vector.broadcast %6 : vector<1x256xf32> to vector<4x256xf32>
    %159 = arith.mulf %157, %158 : vector<4x256xf32>
    %c240_i32_64 = arith.constant 240 : i32
    %160 = tpu.dynamic_rotate %136 by %c240_i32_64 dim 1 : vector<4x256xf32>, i32 -> vector<4x256xf32>
    %161 = vector.broadcast %7 : vector<1x256xf32> to vector<4x256xf32>
    %162 = arith.mulf %160, %161 : vector<4x256xf32>
    %c239_i32_65 = arith.constant 239 : i32
    %163 = tpu.dynamic_rotate %136 by %c239_i32_65 dim 1 : vector<4x256xf32>, i32 -> vector<4x256xf32>
    %164 = vector.broadcast %8 : vector<1x256xf32> to vector<4x256xf32>
    %165 = arith.mulf %163, %164 : vector<4x256xf32>
    %166 = tpu.concatenate %159, %162, %165 in 0 : vector<4x256xf32>, vector<4x256xf32>, vector<4x256xf32> -> vector<12x256xf32>
    %cst_66 = arith.constant dense<0.000000e+00> : vector<4x256xf32>
    %167 = tpu.matmul %20, %166, %cst_66 {dimension_numbers = #tpu.dot_dimension_numbers<[1], [0], [0], [1], [0, 0, 1, 1], [], []>} : vector<4x12xf32>, vector<12x256xf32>, vector<4x256xf32> -> vector<4x256xf32>
    %168 = arith.addf %156, %167 : vector<4x256xf32>
    %169 = vector.broadcast %22 : vector<4x1xf32> to vector<4x256xf32>
    %170 = arith.addf %168, %169 : vector<4x256xf32>
    %171 = arith.addf %100, %170 : vector<4x256xf32>
    %c1_67 = arith.constant 1 : index
    %c0_68 = arith.constant 0 : index
    %c0_69 = arith.constant 0 : index
    %172 = vector.load %arg7[%c1_67, %c0_68, %c0_69] : memref<2x4x256xf32, #tpu.memory_space<vmem>>, vector<1x4x256xf32>
    %173 = vector.shape_cast %172 : vector<1x4x256xf32> to vector<4x256xf32>
    %174 = vector.shape_cast %171 : vector<4x256xf32> to vector<1x4x256xf32>
    tpu.vector_store %arg7[%c1_67, %c0_68, %c0_69], %174 {strides = array<i32>} : memref<2x4x256xf32, #tpu.memory_space<vmem>>, vector<1x4x256xf32>,
    return
  }
  func.func @transform_0(%arg0: i32) -> (i32, i32, i32) {
    %c0_i32 = arith.constant 0 : i32
    %c0_i32_0 = arith.constant 0 : i32
    %c0_i32_1 = arith.constant 0 : i32
    return %arg0, %c0_i32, %c0_i32_0 : i32, i32, i32
  }
  func.func @transform_1(%arg0: i32) -> (i32, i32) {
    %c0_i32 = arith.constant 0 : i32
    %c0_i32_0 = arith.constant 0 : i32
    %c0_i32_1 = arith.constant 0 : i32
    return %c0_i32, %c0_i32_0 : i32, i32
  }
  func.func @transform_2(%arg0: i32) -> (i32, i32, i32) {
    %c0_i32 = arith.constant 0 : i32
    %c0_i32_0 = arith.constant 0 : i32
    %c0_i32_1 = arith.constant 0 : i32
    %c0_i32_2 = arith.constant 0 : i32
    return %c0_i32, %c0_i32_0, %c0_i32_1 : i32, i32, i32
  }
  func.func @transform_3(%arg0: i32) -> (i32, i32) {
    %c0_i32 = arith.constant 0 : i32
    %c0_i32_0 = arith.constant 0 : i32
    %c0_i32_1 = arith.constant 0 : i32
    return %c0_i32, %c0_i32_0 : i32, i32
  }
  func.func @transform_4(%arg0: i32) -> (i32, i32, i32) {
    %c0_i32 = arith.constant 0 : i32
    %c0_i32_0 = arith.constant 0 : i32
    %c0_i32_1 = arith.constant 0 : i32
    %c0_i32_2 = arith.constant 0 : i32
    return %c0_i32, %c0_i32_0, %c0_i32_1 : i32, i32, i32
  }
  func.func @transform_5(%arg0: i32) -> (i32, i32) {
    %c0_i32 = arith.constant 0 : i32
    %c0_i32_0 = arith.constant 0 : i32
    %c0_i32_1 = arith.constant 0 : i32
    return %c0_i32, %c0_i32_0 : i32, i32
  }
  func.func @transform_6(%arg0: i32) -> (i32, i32, i32) {
    %c0_i32 = arith.constant 0 : i32
    %c0_i32_0 = arith.constant 0 : i32
    %c0_i32_1 = arith.constant 0 : i32
    return %arg0, %c0_i32, %c0_i32_0 : i32, i32, i32
  }
}

</mosaic_0001>

<llo_original>
// kernel: resblock_pallas.1
$region0: #{resblock_pallas.1}
  #allocation0 [shape = 'u32[]', space=smem, size = 0x4, offset = 0x4, fixed_abs, tag = 'smem constant byte address 0x4 - core index']
  #allocation1 [shape = 'u32[144,128]{1,0:T(1,128)}', space=vmem, size = 0x12000, scoped, tag = 'internal scratch']
  %s0 = inlined_call_operand.vmem [shape: f32[2,4,256], index: 0, kind: input, shape index: {}]
  %s1 = inlined_call_operand.vmem [shape: f32[9,256], index: 1, kind: input, shape index: {}]
  %s2 = inlined_call_operand.vmem [shape: f32[3,4,12], index: 2, kind: input, shape index: {}]
  %s3 = inlined_call_operand.vmem [shape: f32[4,1], index: 3, kind: input, shape index: {}]
  %s4 = inlined_call_operand.vmem [shape: f32[3,4,12], index: 4, kind: input, shape index: {}]
  %s5 = inlined_call_operand.vmem [shape: f32[4,1], index: 5, kind: input, shape index: {}]
  %s6 = inlined_call_operand.vmem [shape: f32[2,4,256], index: 6, kind: output, shape index: {}]
  %s7 = sld [smem:[#allocation0]]
  $region34: #{resblock_pallas.1} parent=0
    _
  %s9 = ssub.s32 1, %s7
  %s10 = scalar_select 0, %s9, %s7
  // Predicated region
  $region2: #{resblock_pallas.1} parent=0 // pred_check
    _
  $region3: #{resblock_pallas.1} parent=0 // pred_check_branch
    %12 = sbr.rel (0) target = $region5
  $region4: #{resblock_pallas.1} parent=0 // pred_region
    _
  $region5: #{resblock_pallas.1} parent=0 // pred_fallthru
    _
  // Predicated region
  $region6: #{resblock_pallas.1} parent=0 // pred_check
    _
  $region7: #{resblock_pallas.1} parent=0 // pred_check_branch
    %14 = sbr.rel (0) target = $region9
  $region8: #{resblock_pallas.1} parent=0 // pred_region
    _
  $region9: #{resblock_pallas.1} parent=0 // pred_fallthru
    _
  // Predicated region
  $region10: #{resblock_pallas.1} parent=0 // pred_check
    _
  $region11: #{resblock_pallas.1} parent=0 // pred_check_branch
    %16 = sbr.rel (0) target = $region13
  $region12: #{resblock_pallas.1} parent=0 // pred_region
    _
  $region13: #{resblock_pallas.1} parent=0 // pred_fallthru
    _
  // Predicated region
  $region14: #{resblock_pallas.1} parent=0 // pred_check
    _
  $region15: #{resblock_pallas.1} parent=0 // pred_check_branch
    %18 = sbr.rel (0) target = $region17
  $region16: #{resblock_pallas.1} parent=0 // pred_region
    _
  $region17: #{resblock_pallas.1} parent=0 // pred_fallthru
    _
  // Predicated region
  $region18: #{resblock_pallas.1} parent=0 // pred_check
    _
  $region19: #{resblock_pallas.1} parent=0 // pred_check_branch
    %20 = sbr.rel (0) target = $region21
  $region20: #{resblock_pallas.1} parent=0 // pred_region
    _
  $region21: #{resblock_pallas.1} parent=0 // pred_fallthru
    _
  // Predicated region
  $region22: #{resblock_pallas.1} parent=0 // pred_check
    _
  $region23: #{resblock_pallas.1} parent=0 // pred_check_branch
    %22 = sbr.rel (0) target = $region25
  $region24: #{resblock_pallas.1} parent=0 // pred_region
    _
  $region25: #{resblock_pallas.1} parent=0 // pred_fallthru
    _
  %v23 = vld [vmem:[%s1] sm:$0xff]
  %v24 = vld [vmem:[%s1 + $0x8] sm:$0xff]
  %v25 = vld [vmem:[%s1 + $0x10] sm:$0x1]
  %v26 = vld [vmem:[%s1 + $0x18] sm:$0x1]
  %v27 = vld [vmem:[%s2] sm:$0xf]
  %s28 = scalar_lea.vmem %s2, 4
  %v29 = vld [vmem:[%s28] sm:$0xf]
  %s30 = scalar_lea.vmem %s2, 8
  %v31 = vld [vmem:[%s30] sm:$0xf]
  %v32 = vld [vmem:[%s4] sm:$0xf]
  %s33 = scalar_lea.vmem %s4, 4
  %v34 = vld [vmem:[%s33] sm:$0xf]
  %s35 = scalar_lea.vmem %s4, 8
  %v36 = vld [vmem:[%s35] sm:$0xf]
  %v37 = vld [vmem:[%s3] sm:$0xf]
  %v38 = vld [vmem:[%s5] sm:$0xf]
  %v39 = vld [vmem:[%s0] sm:$0xff]
  %v41 = vcombine.high %v39, %v39
  %43 = vrot.lane.b32.xlu0 %v39, 17
  %v44 = vpop.permute.xlu0 %43
  %45 = vrot.lane.b32.xlu0 %v41, 17
  %v46 = vpop.permute.xlu0 %45
  %v47 = vlaneseq
  %v48 = vand.u32 %v47, 127
  %vm49 = vcmp.lt.s32.totalorder %v48, 17
  %v50 = vsel %vm49, %v44, %v46
  %v51 = vsel %vm49, %v46, %v44
  %v52 = vlaneseq
  %v53 = vshrl.u32 %v52, 7
  %v54 = vsub.s32 0, %v53
  %v55 = vrot.slane %v23, %v54
  %v56 = vlaneseq
  %v57 = vshrl.u32 %v56, 7
  %v58 = vsub.s32 0, %v57
  %v59 = vrot.slane %v24, %v58
  %v60 = vmul.f32 %v51, %v55
  %v61 = vmul.f32 %v50, %v59
  %62 = vrot.lane.b32.xlu0 %v39, 16
  %v63 = vpop.permute.xlu0 %62
  %64 = vrot.lane.b32.xlu0 %v41, 16
  %v65 = vpop.permute.xlu0 %64
  %vm66 = vcmp.lt.s32.totalorder %v48, 16
  %v67 = vsel %vm66, %v63, %v65
  %v68 = vsel %vm66, %v65, %v63
  %v69 = vlaneseq
  %v70 = vshrl.u32 %v69, 7
  %v71 = vsub.s32 1, %v70
  %v72 = vrot.slane %v23, %v71
  %v73 = vlaneseq
  %v74 = vshrl.u32 %v73, 7
  %v75 = vsub.s32 1, %v74
  %v76 = vrot.slane %v24, %v75
  %v77 = vmul.f32 %v68, %v72
  %v78 = vmul.f32 %v67, %v76
  %79 = vrot.lane.b32.xlu0 %v39, 15
  %v80 = vpop.permute.xlu0 %79
  %81 = vrot.lane.b32.xlu0 %v41, 15
  %v82 = vpop.permute.xlu0 %81
  %vm83 = vcmp.lt.s32.totalorder %v48, 15
  %v84 = vsel %vm83, %v80, %v82
  %v85 = vsel %vm83, %v82, %v80
  %v86 = vlaneseq
  %v87 = vshrl.u32 %v86, 7
  %v88 = vsub.s32 2, %v87
  %v89 = vrot.slane %v23, %v88
  %v90 = vlaneseq
  %v91 = vshrl.u32 %v90, 7
  %v92 = vsub.s32 2, %v91
  %v93 = vrot.slane %v24, %v92
  %v94 = vmul.f32 %v85, %v89
  %v95 = vmul.f32 %v84, %v93
  %v98 = vrot.slane %v77, 4
  %v99 = vrot.slane %v78, 4
  %vm102 = vcmask 1043456
  %v103 = vsel %vm102, %v60, %v98
  %v104 = vsel %vm102, %v61, %v99
  %105 = vrot.lane.b32.xlu0 %v39, 1
  %v106 = vpop.permute.xlu0 %105
  %107 = vrot.lane.b32.xlu0 %v41, 1
  %v108 = vpop.permute.xlu0 %107
  %vm109 = vcmp.lt.s32.totalorder %v48, 1
  %v110 = vsel %vm109, %v106, %v108
  %v111 = vsel %vm109, %v108, %v106
  %v112 = vlaneseq
  %v113 = vshrl.u32 %v112, 7
  %v114 = vsub.s32 3, %v113
  %v115 = vrot.slane %v23, %v114
  %v116 = vlaneseq
  %v117 = vshrl.u32 %v116, 7
  %v118 = vsub.s32 3, %v117
  %v119 = vrot.slane %v24, %v118
  %v120 = vmul.f32 %v111, %v115
  %v121 = vmul.f32 %v110, %v119
  %122 = vrot.lane.b32.xlu0 %v39, 127
  %v123 = vpop.permute.xlu0 %122
  %124 = vrot.lane.b32.xlu0 %v41, 127
  %v125 = vpop.permute.xlu0 %124
  %vm126 = vcmp.lt.s32.totalorder %v48, 127
  %v127 = vsel %vm126, %v123, %v125
  %v128 = vsel %vm126, %v125, %v123
  %v129 = vlaneseq
  %v130 = vshrl.u32 %v129, 7
  %v131 = vsub.s32 5, %v130
  %v132 = vrot.slane %v23, %v131
  %v133 = vlaneseq
  %v134 = vshrl.u32 %v133, 7
  %v135 = vsub.s32 5, %v134
  %v136 = vrot.slane %v24, %v135
  %v137 = vmul.f32 %v127, %v132
  %v138 = vmul.f32 %v128, %v136
  %v139 = vcombine.low %v39, %v39
  %v141 = vsel %vm102, %v120, %v139
  %v142 = vsel %vm102, %v121, %v39
  %vm143 = vcmask 97280
  %v145 = vsel %vm143, %v29, 0
  %v148 = vsel %vm102, %v137, 0
  %v151 = vsel %vm102, %v138, 0
  %153 = vmatprep.subr.mxu0 %v142
  %154 = vmatpush1.msra.mxu0 %v141
  %155 = vmatprep.subr.mxu0 %v151
  %156 = vmatpush1.msra.mxu0 %v148
  %157 = vmatprep.subr.mxu0 0.0
  %158 = vmatpush1.msra.mxu0 0.0
  %159 = vmatprep.subr.mxu0 0.0
  %160 = vmatpush1.msra.mxu0 0.0
  %161 = vmatprep.subr.mxu0 0.0
  %162 = vmatpush1.msra.mxu0 0.0
  %163 = vmatprep.subr.mxu0 0.0
  %164 = vmatpush1.msra.mxu0 0.0
  %165 = vmatprep.subr.mxu0 0.0
  %166 = vmatpush1.msra.mxu0 0.0
  %167 = vmatprep.subr.mxu0 0.0
  %168 = vmatpush1.msra.mxu0 0.0
  %169 = vmatprep.subr.mxu0 0.0
  %170 = vmatpush1.msra.mxu0 0.0
  %171 = vmatprep.subr.mxu0 0.0
  %172 = vmatpush1.msra.mxu0 0.0
  %173 = vmatprep.subr.mxu0 0.0
  %174 = vmatpush1.msra.mxu0 0.0
  %175 = vmatprep.subr.mxu0 0.0
  %176 = vmatpush1.msra.mxu0 0.0
  %177 = vmatprep.subr.mxu0 0.0
  %178 = vmatpush1.msra.mxu0 0.0
  %179 = vmatprep.subr.mxu0 0.0
  %180 = vmatpush1.msra.mxu0 0.0
  %181 = vmatprep.subr.mxu0 0.0
  %182 = vmatpush1.msra.mxu0 0.0
  %183 = vmatprep.subr.mxu0 0.0
  %184 = vmatpush1.msra.mxu0 0.0
  %185 = vmatprep.subr.mxu0 0.0
  %186 = vmatpush1.msra.mxu0 0.0
  %187 = vmatprep.subr.mxu0 0.0
  %188 = vmatpush1.msra.mxu0 0.0
  %189 = vmatprep.subr.mxu0 0.0
  %190 = vmatpush1.msra.mxu0 0.0
  %191 = vmatprep.subr.mxu0 0.0
  %192 = vmatpush1.msra.mxu0 0.0
  %193 = vmatprep.subr.mxu0 0.0
  %194 = vmatpush1.msra.mxu0 0.0
  %195 = vmatprep.subr.mxu0 0.0
  %196 = vmatpush1.msra.mxu0 0.0
  %197 = vmatprep.subr.mxu0 0.0
  %198 = vmatpush1.msra.mxu0 0.0
  %199 = vmatprep.subr.mxu0 0.0
  %200 = vmatpush1.msra.mxu0 0.0
  %201 = vmatprep.subr.mxu0 0.0
  %202 = vmatpush1.msra.mxu0 0.0
  %203 = vmatprep.subr.mxu0 0.0
  %204 = vmatpush1.msra.mxu0 0.0
  %205 = vmatprep.subr.mxu0 0.0
  %206 = vmatpush1.msra.mxu0 0.0
  %207 = vmatprep.subr.mxu0 0.0
  %208 = vmatpush1.msra.mxu0 0.0
  %209 = vmatprep.subr.mxu0 0.0
  %210 = vmatpush1.msra.mxu0 0.0
  %211 = vmatprep.subr.mxu0 0.0
  %212 = vmatpush1.msra.mxu0 0.0
  %213 = vmatprep.subr.mxu0 0.0
  %214 = vmatpush1.msra.mxu0 0.0
  %215 = vmatprep.subr.mxu0 0.0
  %216 = vmatpush1.msra.mxu0 0.0
  %217 = vmatprep.mubr.f32.mxu0 0.0
  %218 = vmatmul.mubr.f32.gmra.mrb[0].mxu0 %v145
  %v219 = vpop.f32.mrb[0].mxu0
  %v220 = vadd.f32 0.0, %v219
  %v221 = vpop.f32.mrb[0].mxu0
  %v222 = vadd.f32 0.0, %v221
  %223 = vdwg.mxu0
  %v225 = vsel %vm143, %v27, 0
  %v228 = vsel %vm102, %v94, 0
  %v231 = vsel %vm102, %v95, 0
  %233 = vmatprep.subr.mxu0 %v104
  %234 = vmatpush1.msra.mxu0 %v103
  %235 = vmatprep.subr.mxu0 %v231
  %236 = vmatpush1.msra.mxu0 %v228
  %237 = vmatprep.subr.mxu0 0.0
  %238 = vmatpush1.msra.mxu0 0.0
  %239 = vmatprep.subr.mxu0 0.0
  %240 = vmatpush1.msra.mxu0 0.0
  %241 = vmatprep.subr.mxu0 0.0
  %242 = vmatpush1.msra.mxu0 0.0
  %243 = vmatprep.subr.mxu0 0.0
  %244 = vmatpush1.msra.mxu0 0.0
  %245 = vmatprep.subr.mxu0 0.0
  %246 = vmatpush1.msra.mxu0 0.0
  %247 = vmatprep.subr.mxu0 0.0
  %248 = vmatpush1.msra.mxu0 0.0
  %249 = vmatprep.subr.mxu0 0.0
  %250 = vmatpush1.msra.mxu0 0.0
  %251 = vmatprep.subr.mxu0 0.0
  %252 = vmatpush1.msra.mxu0 0.0
  %253 = vmatprep.subr.mxu0 0.0
  %254 = vmatpush1.msra.mxu0 0.0
  %255 = vmatprep.subr.mxu0 0.0
  %256 = vmatpush1.msra.mxu0 0.0
  %257 = vmatprep.subr.mxu0 0.0
  %258 = vmatpush1.msra.mxu0 0.0
  %259 = vmatprep.subr.mxu0 0.0
  %260 = vmatpush1.msra.mxu0 0.0
  %261 = vmatprep.subr.mxu0 0.0
  %262 = vmatpush1.msra.mxu0 0.0
  %263 = vmatprep.subr.mxu0 0.0
  %264 = vmatpush1.msra.mxu0 0.0
  %265 = vmatprep.subr.mxu0 0.0
  %266 = vmatpush1.msra.mxu0 0.0
  %267 = vmatprep.subr.mxu0 0.0
  %268 = vmatpush1.msra.mxu0 0.0
  %269 = vmatprep.subr.mxu0 0.0
  %270 = vmatpush1.msra.mxu0 0.0
  %271 = vmatprep.subr.mxu0 0.0
  %272 = vmatpush1.msra.mxu0 0.0
  %273 = vmatprep.subr.mxu0 0.0
  %274 = vmatpush1.msra.mxu0 0.0
  %275 = vmatprep.subr.mxu0 0.0
  %276 = vmatpush1.msra.mxu0 0.0
  %277 = vmatprep.subr.mxu0 0.0
  %278 = vmatpush1.msra.mxu0 0.0
  %279 = vmatprep.subr.mxu0 0.0
  %280 = vmatpush1.msra.mxu0 0.0
  %281 = vmatprep.subr.mxu0 0.0
  %282 = vmatpush1.msra.mxu0 0.0
  %283 = vmatprep.subr.mxu0 0.0
  %284 = vmatpush1.msra.mxu0 0.0
  %285 = vmatprep.subr.mxu0 0.0
  %286 = vmatpush1.msra.mxu0 0.0
  %287 = vmatprep.subr.mxu0 0.0
  %288 = vmatpush1.msra.mxu0 0.0
  %289 = vmatprep.subr.mxu0 0.0
  %290 = vmatpush1.msra.mxu0 0.0
  %291 = vmatprep.subr.mxu0 0.0
  %292 = vmatpush1.msra.mxu0 0.0
  %293 = vmatprep.subr.mxu0 0.0
  %294 = vmatpush1.msra.mxu0 0.0
  %295 = vmatprep.subr.mxu0 0.0
  %296 = vmatpush1.msra.mxu0 0.0
  %297 = vmatprep.mubr.f32.mxu0 0.0
  %298 = vmatmul.mubr.f32.gmra.mrb[0].mxu0 %v225
  %v299 = vpop.f32.mrb[0].mxu0
  %v300 = vadd.f32 %v220, %v299
  %v301 = vpop.f32.mrb[0].mxu0
  %v302 = vadd.f32 %v222, %v301
  %303 = vdwg.mxu0
  %304 = vrot.lane.b32.xlu0 %v39, 113
  %v305 = vpop.permute.xlu0 %304
  %306 = vrot.lane.b32.xlu0 %v41, 113
  %v307 = vpop.permute.xlu0 %306
  %vm308 = vcmp.lt.s32.totalorder %v48, 113
  %v309 = vsel %vm308, %v305, %v307
  %v310 = vsel %vm308, %v307, %v305
  %v311 = vlaneseq
  %v312 = vshrl.u32 %v311, 7
  %v313 = vsub.s32 6, %v312
  %v314 = vrot.slane %v23, %v313
  %v315 = vlaneseq
  %v316 = vshrl.u32 %v315, 7
  %v317 = vsub.s32 6, %v316
  %v318 = vrot.slane %v24, %v317
  %v319 = vmul.f32 %v309, %v314
  %v320 = vmul.f32 %v310, %v318
  %321 = vrot.lane.b32.xlu0 %v39, 112
  %v322 = vpop.permute.xlu0 %321
  %323 = vrot.lane.b32.xlu0 %v41, 112
  %v324 = vpop.permute.xlu0 %323
  %vm325 = vcmp.lt.s32.totalorder %v48, 112
  %v326 = vsel %vm325, %v322, %v324
  %v327 = vsel %vm325, %v324, %v322
  %v328 = vlaneseq
  %v329 = vshrl.u32 %v328, 7
  %v330 = vsub.s32 7, %v329
  %v331 = vrot.slane %v23, %v330
  %v332 = vlaneseq
  %v333 = vshrl.u32 %v332, 7
  %v334 = vsub.s32 7, %v333
  %v335 = vrot.slane %v24, %v334
  %v336 = vmul.f32 %v326, %v331
  %v337 = vmul.f32 %v327, %v335
  %338 = vrot.lane.b32.xlu0 %v39, 111
  %v339 = vpop.permute.xlu0 %338
  %340 = vrot.lane.b32.xlu0 %v41, 111
  %v341 = vpop.permute.xlu0 %340
  %vm342 = vcmp.lt.s32.totalorder %v48, 111
  %v343 = vsel %vm342, %v339, %v341
  %v344 = vsel %vm342, %v341, %v339
  %v345 = vlaneseq
  %v346 = vshrl.u32 %v345, 7
  %v347 = vsub.s32 0, %v346
  %v348 = vrot.slane %v25, %v347
  %v349 = vlaneseq
  %v350 = vshrl.u32 %v349, 7
  %v351 = vsub.s32 0, %v350
  %v352 = vrot.slane %v26, %v351
  %v353 = vmul.f32 %v343, %v348
  %v354 = vmul.f32 %v344, %v352
  %v357 = vrot.slane %v336, 4
  %v358 = vrot.slane %v337, 4
  %v361 = vsel %vm102, %v319, %v357
  %v362 = vsel %vm102, %v320, %v358
  %v364 = vsel %vm143, %v31, 0
  %v367 = vsel %vm102, %v353, 0
  %v370 = vsel %vm102, %v354, 0
  %372 = vmatprep.subr.mxu0 %v362
  %373 = vmatpush1.msra.mxu0 %v361
  %374 = vmatprep.subr.mxu0 %v370
  %375 = vmatpush1.msra.mxu0 %v367
  %376 = vmatprep.subr.mxu0 0.0
  %377 = vmatpush1.msra.mxu0 0.0
  %378 = vmatprep.subr.mxu0 0.0
  %379 = vmatpush1.msra.mxu0 0.0
  %380 = vmatprep.subr.mxu0 0.0
  %381 = vmatpush1.msra.mxu0 0.0
  %382 = vmatprep.subr.mxu0 0.0
  %383 = vmatpush1.msra.mxu0 0.0
  %384 = vmatprep.subr.mxu0 0.0
  %385 = vmatpush1.msra.mxu0 0.0
  %386 = vmatprep.subr.mxu0 0.0
  %387 = vmatpush1.msra.mxu0 0.0
  %388 = vmatprep.subr.mxu0 0.0
  %389 = vmatpush1.msra.mxu0 0.0
  %390 = vmatprep.subr.mxu0 0.0
  %391 = vmatpush1.msra.mxu0 0.0
  %392 = vmatprep.subr.mxu0 0.0
  %393 = vmatpush1.msra.mxu0 0.0
  %394 = vmatprep.subr.mxu0 0.0
  %395 = vmatpush1.msra.mxu0 0.0
  %396 = vmatprep.subr.mxu0 0.0
  %397 = vmatpush1.msra.mxu0 0.0
  %398 = vmatprep.subr.mxu0 0.0
  %399 = vmatpush1.msra.mxu0 0.0
  %400 = vmatprep.subr.mxu0 0.0
  %401 = vmatpush1.msra.mxu0 0.0
  %402 = vmatprep.subr.mxu0 0.0
  %403 = vmatpush1.msra.mxu0 0.0
  %404 = vmatprep.subr.mxu0 0.0
  %405 = vmatpush1.msra.mxu0 0.0
  %406 = vmatprep.subr.mxu0 0.0
  %407 = vmatpush1.msra.mxu0 0.0
  %408 = vmatprep.subr.mxu0 0.0
  %409 = vmatpush1.msra.mxu0 0.0
  %410 = vmatprep.subr.mxu0 0.0
  %411 = vmatpush1.msra.mxu0 0.0
  %412 = vmatprep.subr.mxu0 0.0
  %413 = vmatpush1.msra.mxu0 0.0
  %414 = vmatprep.subr.mxu0 0.0
  %415 = vmatpush1.msra.mxu0 0.0
  %416 = vmatprep.subr.mxu0 0.0
  %417 = vmatpush1.msra.mxu0 0.0
  %418 = vmatprep.subr.mxu0 0.0
  %419 = vmatpush1.msra.mxu0 0.0
  %420 = vmatprep.subr.mxu0 0.0
  %421 = vmatpush1.msra.mxu0 0.0
  %422 = vmatprep.subr.mxu0 0.0
  %423 = vmatpush1.msra.mxu0 0.0
  %424 = vmatprep.subr.mxu0 0.0
  %425 = vmatpush1.msra.mxu0 0.0
  %426 = vmatprep.subr.mxu0 0.0
  %427 = vmatpush1.msra.mxu0 0.0
  %428 = vmatprep.subr.mxu0 0.0
  %429 = vmatpush1.msra.mxu0 0.0
  %430 = vmatprep.subr.mxu0 0.0
  %431 = vmatpush1.msra.mxu0 0.0
  %432 = vmatprep.subr.mxu0 0.0
  %433 = vmatpush1.msra.mxu0 0.0
  %434 = vmatprep.subr.mxu0 0.0
  %435 = vmatpush1.msra.mxu0 0.0
  %436 = vmatprep.mubr.f32.mxu0 0.0
  %437 = vmatmul.mubr.f32.gmra.mrb[0].mxu0 %v364
  %v438 = vpop.f32.mrb[0].mxu0
  %v439 = vadd.f32 0.0, %v438
  %v440 = vpop.f32.mrb[0].mxu0
  %v441 = vadd.f32 0.0, %v440
  %442 = vdwg.mxu0
  %v443 = vadd.f32 %v300, %v439
  %v444 = vadd.f32 %v302, %v441
  %446 = vset.pattern.permute.xlu0 0
  %447 = vperm.xlu0 %446, %v37
  %v448 = vpop.permute.xlu0 %447
  %v450 = vadd.f32 %v443, %v448
  %v451 = vadd.f32 %v444, %v448
  %v452 = vmax.f32 %v450, 0.0
  %v453 = vmax.f32 %v451, 0.0
  %454 = vrot.lane.b32.xlu0 %v452, 17
  %v455 = vpop.permute.xlu0 %454
  %456 = vrot.lane.b32.xlu0 %v453, 17
  %v457 = vpop.permute.xlu0 %456
  %v458 = vsel %vm49, %v455, %v457
  %v459 = vsel %vm49, %v457, %v455
  %v460 = vmul.f32 %v459, %v55
  %v461 = vmul.f32 %v458, %v59
  %462 = vrot.lane.b32.xlu0 %v452, 16
  %v463 = vpop.permute.xlu0 %462
  %464 = vrot.lane.b32.xlu0 %v453, 16
  %v465 = vpop.permute.xlu0 %464
  %v466 = vsel %vm66, %v463, %v465
  %v467 = vsel %vm66, %v465, %v463
  %v468 = vmul.f32 %v467, %v72
  %v469 = vmul.f32 %v466, %v76
  %470 = vrot.lane.b32.xlu0 %v452, 15
  %v471 = vpop.permute.xlu0 %470
  %472 = vrot.lane.b32.xlu0 %v453, 15
  %v473 = vpop.permute.xlu0 %472
  %v474 = vsel %vm83, %v471, %v473
  %v475 = vsel %vm83, %v473, %v471
  %v476 = vmul.f32 %v475, %v89
  %v477 = vmul.f32 %v474, %v93
  %v480 = vrot.slane %v468, 4
  %v481 = vrot.slane %v469, 4
  %v484 = vsel %vm102, %v460, %v480
  %v485 = vsel %vm102, %v461, %v481
  %486 = vrot.lane.b32.xlu0 %v452, 1
  %v487 = vpop.permute.xlu0 %486
  %488 = vrot.lane.b32.xlu0 %v453, 1
  %v489 = vpop.permute.xlu0 %488
  %v490 = vsel %vm109, %v487, %v489
  %v491 = vsel %vm109, %v489, %v487
  %v492 = vmul.f32 %v491, %v115
  %v493 = vmul.f32 %v490, %v119
  %494 = vrot.lane.b32.xlu0 %v452, 127
  %v495 = vpop.permute.xlu0 %494
  %496 = vrot.lane.b32.xlu0 %v453, 127
  %v497 = vpop.permute.xlu0 %496
  %v498 = vsel %vm126, %v495, %v497
  %v499 = vsel %vm126, %v497, %v495
  %v500 = vmul.f32 %v498, %v132
  %v501 = vmul.f32 %v499, %v136
  %v504 = vrot.slane %v452, 4
  %v505 = vrot.slane %v453, 4
  %v508 = vsel %vm102, %v492, %v504
  %v509 = vsel %vm102, %v493, %v505
  %v511 = vsel %vm143, %v34, 0
  %v514 = vsel %vm102, %v500, 0
  %v517 = vsel %vm102, %v501, 0
  %519 = vmatprep.subr.mxu0 %v509
  %520 = vmatpush1.msra.mxu0 %v508
  %521 = vmatprep.subr.mxu0 %v517
  %522 = vmatpush1.msra.mxu0 %v514
  %523 = vmatprep.subr.mxu0 0.0
  %524 = vmatpush1.msra.mxu0 0.0
  %525 = vmatprep.subr.mxu0 0.0
  %526 = vmatpush1.msra.mxu0 0.0
  %527 = vmatprep.subr.mxu0 0.0
  %528 = vmatpush1.msra.mxu0 0.0
  %529 = vmatprep.subr.mxu0 0.0
  %530 = vmatpush1.msra.mxu0 0.0
  %531 = vmatprep.subr.mxu0 0.0
  %532 = vmatpush1.msra.mxu0 0.0
  %533 = vmatprep.subr.mxu0 0.0
  %534 = vmatpush1.msra.mxu0 0.0
  %535 = vmatprep.subr.mxu0 0.0
  %536 = vmatpush1.msra.mxu0 0.0
  %537 = vmatprep.subr.mxu0 0.0
  %538 = vmatpush1.msra.mxu0 0.0
  %539 = vmatprep.subr.mxu0 0.0
  %540 = vmatpush1.msra.mxu0 0.0
  %541 = vmatprep.subr.mxu0 0.0
  %542 = vmatpush1.msra.mxu0 0.0
  %543 = vmatprep.subr.mxu0 0.0
  %544 = vmatpush1.msra.mxu0 0.0
  %545 = vmatprep.subr.mxu0 0.0
  %546 = vmatpush1.msra.mxu0 0.0
  %547 = vmatprep.subr.mxu0 0.0
  %548 = vmatpush1.msra.mxu0 0.0
  %549 = vmatprep.subr.mxu0 0.0
  %550 = vmatpush1.msra.mxu0 0.0
  %551 = vmatprep.subr.mxu0 0.0
  %552 = vmatpush1.msra.mxu0 0.0
  %553 = vmatprep.subr.mxu0 0.0
  %554 = vmatpush1.msra.mxu0 0.0
  %555 = vmatprep.subr.mxu0 0.0
  %556 = vmatpush1.msra.mxu0 0.0
  %557 = vmatprep.subr.mxu0 0.0
  %558 = vmatpush1.msra.mxu0 0.0
  %559 = vmatprep.subr.mxu0 0.0
  %560 = vmatpush1.msra.mxu0 0.0
  %561 = vmatprep.subr.mxu0 0.0
  %562 = vmatpush1.msra.mxu0 0.0
  %563 = vmatprep.subr.mxu0 0.0
  %564 = vmatpush1.msra.mxu0 0.0
  %565 = vmatprep.subr.mxu0 0.0
  %566 = vmatpush1.msra.mxu0 0.0
  %567 = vmatprep.subr.mxu0 0.0
  %568 = vmatpush1.msra.mxu0 0.0
  %569 = vmatprep.subr.mxu0 0.0
  %570 = vmatpush1.msra.mxu0 0.0
  %571 = vmatprep.subr.mxu0 0.0
  %572 = vmatpush1.msra.mxu0 0.0
  %573 = vmatprep.subr.mxu0 0.0
  %574 = vmatpush1.msra.mxu0 0.0
  %575 = vmatprep.subr.mxu0 0.0
  %576 = vmatpush1.msra.mxu0 0.0
  %577 = vmatprep.subr.mxu0 0.0
  %578 = vmatpush1.msra.mxu0 0.0
  %579 = vmatprep.subr.mxu0 0.0
  %580 = vmatpush1.msra.mxu0 0.0
  %581 = vmatprep.subr.mxu0 0.0
  %582 = vmatpush1.msra.mxu0 0.0
  %583 = vmatprep.mubr.f32.mxu0 0.0
  %584 = vmatmul.mubr.f32.gmra.mrb[0].mxu0 %v511
  %v585 = vpop.f32.mrb[0].mxu0
  %v586 = vadd.f32 0.0, %v585
  %v587 = vpop.f32.mrb[0].mxu0
  %v588 = vadd.f32 0.0, %v587
  %589 = vdwg.mxu0
  %v591 = vsel %vm143, %v32, 0
  %v594 = vsel %vm102, %v476, 0
  %v597 = vsel %vm102, %v477, 0
  %599 = vmatprep.subr.mxu0 %v485
  %600 = vmatpush1.msra.mxu0 %v484
  %601 = vmatprep.subr.mxu0 %v597
  %602 = vmatpush1.msra.mxu0 %v594
  %603 = vmatprep.subr.mxu0 0.0
  %604 = vmatpush1.msra.mxu0 0.0
  %605 = vmatprep.subr.mxu0 0.0
  %606 = vmatpush1.msra.mxu0 0.0
  %607 = vmatprep.subr.mxu0 0.0
  %608 = vmatpush1.msra.mxu0 0.0
  %609 = vmatprep.subr.mxu0 0.0
  %610 = vmatpush1.msra.mxu0 0.0
  %611 = vmatprep.subr.mxu0 0.0
  %612 = vmatpush1.msra.mxu0 0.0
  %613 = vmatprep.subr.mxu0 0.0
  %614 = vmatpush1.msra.mxu0 0.0
  %615 = vmatprep.subr.mxu0 0.0
  %616 = vmatpush1.msra.mxu0 0.0
  %617 = vmatprep.subr.mxu0 0.0
  %618 = vmatpush1.msra.mxu0 0.0
  %619 = vmatprep.subr.mxu0 0.0
  %620 = vmatpush1.msra.mxu0 0.0
  %621 = vmatprep.subr.mxu0 0.0
  %622 = vmatpush1.msra.mxu0 0.0
  %623 = vmatprep.subr.mxu0 0.0
  %624 = vmatpush1.msra.mxu0 0.0
  %625 = vmatprep.subr.mxu0 0.0
  %626 = vmatpush1.msra.mxu0 0.0
  %627 = vmatprep.subr.mxu0 0.0
  %628 = vmatpush1.msra.mxu0 0.0
  %629 = vmatprep.subr.mxu0 0.0
  %630 = vmatpush1.msra.mxu0 0.0
  %631 = vmatprep.subr.mxu0 0.0
  %632 = vmatpush1.msra.mxu0 0.0
  %633 = vmatprep.subr.mxu0 0.0
  %634 = vmatpush1.msra.mxu0 0.0
  %635 = vmatprep.subr.mxu0 0.0
  %636 = vmatpush1.msra.mxu0 0.0
  %637 = vmatprep.subr.mxu0 0.0
  %638 = vmatpush1.msra.mxu0 0.0
  %639 = vmatprep.subr.mxu0 0.0
  %640 = vmatpush1.msra.mxu0 0.0
  %641 = vmatprep.subr.mxu0 0.0
  %642 = vmatpush1.msra.mxu0 0.0
  %643 = vmatprep.subr.mxu0 0.0
  %644 = vmatpush1.msra.mxu0 0.0
  %645 = vmatprep.subr.mxu0 0.0
  %646 = vmatpush1.msra.mxu0 0.0
  %647 = vmatprep.subr.mxu0 0.0
  %648 = vmatpush1.msra.mxu0 0.0
  %649 = vmatprep.subr.mxu0 0.0
  %650 = vmatpush1.msra.mxu0 0.0
  %651 = vmatprep.subr.mxu0 0.0
  %652 = vmatpush1.msra.mxu0 0.0
  %653 = vmatprep.subr.mxu0 0.0
  %654 = vmatpush1.msra.mxu0 0.0
  %655 = vmatprep.subr.mxu0 0.0
  %656 = vmatpush1.msra.mxu0 0.0
  %657 = vmatprep.subr.mxu0 0.0
  %658 = vmatpush1.msra.mxu0 0.0
  %659 = vmatprep.subr.mxu0 0.0
  %660 = vmatpush1.msra.mxu0 0.0
  %661 = vmatprep.subr.mxu0 0.0
  %662 = vmatpush1.msra.mxu0 0.0
  %663 = vmatprep.mubr.f32.mxu0 0.0
  %664 = vmatmul.mubr.f32.gmra.mrb[0].mxu0 %v591
  %v665 = vpop.f32.mrb[0].mxu0
  %v666 = vadd.f32 %v586, %v665
  %v667 = vpop.f32.mrb[0].mxu0
  %v668 = vadd.f32 %v588, %v667
  %669 = vdwg.mxu0
  %670 = vrot.lane.b32.xlu0 %v452, 113
  %v671 = vpop.permute.xlu0 %670
  %672 = vrot.lane.b32.xlu0 %v453, 113
  %v673 = vpop.permute.xlu0 %672
  %v674 = vsel %vm308, %v671, %v673
  %v675 = vsel %vm308, %v673, %v671
  %v676 = vmul.f32 %v674, %v314
  %v677 = vmul.f32 %v675, %v318
  %678 = vrot.lane.b32.xlu0 %v452, 112
  %v679 = vpop.permute.xlu0 %678
  %680 = vrot.lane.b32.xlu0 %v453, 112
  %v681 = vpop.permute.xlu0 %680
  %v682 = vsel %vm325, %v679, %v681
  %v683 = vsel %vm325, %v681, %v679
  %v684 = vmul.f32 %v682, %v331
  %v685 = vmul.f32 %v683, %v335
  %686 = vrot.lane.b32.xlu0 %v452, 111
  %v687 = vpop.permute.xlu0 %686
  %688 = vrot.lane.b32.xlu0 %v453, 111
  %v689 = vpop.permute.xlu0 %688
  %v690 = vsel %vm342, %v687, %v689
  %v691 = vsel %vm342, %v689, %v687
  %v692 = vmul.f32 %v690, %v348
  %v693 = vmul.f32 %v691, %v352
  %v696 = vrot.slane %v684, 4
  %v697 = vrot.slane %v685, 4
  %v700 = vsel %vm102, %v676, %v696
  %v701 = vsel %vm102, %v677, %v697
  %v703 = vsel %vm143, %v36, 0
  %v706 = vsel %vm102, %v692, 0
  %v709 = vsel %vm102, %v693, 0
  %711 = vmatprep.subr.mxu0 %v701
  %712 = vmatpush1.msra.mxu0 %v700
  %713 = vmatprep.subr.mxu0 %v709
  %714 = vmatpush1.msra.mxu0 %v706
  %715 = vmatprep.subr.mxu0 0.0
  %716 = vmatpush1.msra.mxu0 0.0
  %717 = vmatprep.subr.mxu0 0.0
  %718 = vmatpush1.msra.mxu0 0.0
  %719 = vmatprep.subr.mxu0 0.0
  %720 = vmatpush1.msra.mxu0 0.0
  %721 = vmatprep.subr.mxu0 0.0
  %722 = vmatpush1.msra.mxu0 0.0
  %723 = vmatprep.subr.mxu0 0.0
  %724 = vmatpush1.msra.mxu0 0.0
  %725 = vmatprep.subr.mxu0 0.0
  %726 = vmatpush1.msra.mxu0 0.0
  %727 = vmatprep.subr.mxu0 0.0
  %728 = vmatpush1.msra.mxu0 0.0
  %729 = vmatprep.subr.mxu0 0.0
  %730 = vmatpush1.msra.mxu0 0.0
  %731 = vmatprep.subr.mxu0 0.0
  %732 = vmatpush1.msra.mxu0 0.0
  %733 = vmatprep.subr.mxu0 0.0
  %734 = vmatpush1.msra.mxu0 0.0
  %735 = vmatprep.subr.mxu0 0.0
  %736 = vmatpush1.msra.mxu0 0.0
  %737 = vmatprep.subr.mxu0 0.0
  %738 = vmatpush1.msra.mxu0 0.0
  %739 = vmatprep.subr.mxu0 0.0
  %740 = vmatpush1.msra.mxu0 0.0
  %741 = vmatprep.subr.mxu0 0.0
  %742 = vmatpush1.msra.mxu0 0.0
  %743 = vmatprep.subr.mxu0 0.0
  %744 = vmatpush1.msra.mxu0 0.0
  %745 = vmatprep.subr.mxu0 0.0
  %746 = vmatpush1.msra.mxu0 0.0
  %747 = vmatprep.subr.mxu0 0.0
  %748 = vmatpush1.msra.mxu0 0.0
  %749 = vmatprep.subr.mxu0 0.0
  %750 = vmatpush1.msra.mxu0 0.0
  %751 = vmatprep.subr.mxu0 0.0
  %752 = vmatpush1.msra.mxu0 0.0
  %753 = vmatprep.subr.mxu0 0.0
  %754 = vmatpush1.msra.mxu0 0.0
  %755 = vmatprep.subr.mxu0 0.0
  %756 = vmatpush1.msra.mxu0 0.0
  %757 = vmatprep.subr.mxu0 0.0
  %758 = vmatpush1.msra.mxu0 0.0
  %759 = vmatprep.subr.mxu0 0.0
  %760 = vmatpush1.msra.mxu0 0.0
  %761 = vmatprep.subr.mxu0 0.0
  %762 = vmatpush1.msra.mxu0 0.0
  %763 = vmatprep.subr.mxu0 0.0
  %764 = vmatpush1.msra.mxu0 0.0
  %765 = vmatprep.subr.mxu0 0.0
  %766 = vmatpush1.msra.mxu0 0.0
  %767 = vmatprep.subr.mxu0 0.0
  %768 = vmatpush1.msra.mxu0 0.0
  %769 = vmatprep.subr.mxu0 0.0
  %770 = vmatpush1.msra.mxu0 0.0
  %771 = vmatprep.subr.mxu0 0.0
  %772 = vmatpush1.msra.mxu0 0.0
  %773 = vmatprep.subr.mxu0 0.0
  %774 = vmatpush1.msra.mxu0 0.0
  %775 = vmatprep.mubr.f32.mxu0 0.0
  %776 = vmatmul.mubr.f32.gmra.mrb[0].mxu0 %v703
  %v777 = vpop.f32.mrb[0].mxu0
  %v778 = vadd.f32 0.0, %v777
  %v779 = vpop.f32.mrb[0].mxu0
  %v780 = vadd.f32 0.0, %v779
  %781 = vdwg.mxu0
  %v782 = vadd.f32 %v666, %v778
  %v783 = vadd.f32 %v668, %v780
  %785 = vset.pattern.permute.xlu0 0
  %786 = vperm.xlu0 %785, %v38
  %v787 = vpop.permute.xlu0 %786
  %v789 = vadd.f32 %v782, %v787
  %v790 = vadd.f32 %v783, %v787
  %v793 = vcombine.low %v789, %v790
  %v795 = vadd.f32 %v39, %v793
  %796 = vst [vmem:[%s6] sm:$0xff] %v795
  %s797 = scalar_lea.vmem %s0, 8
  %v798 = vld [vmem:[%s797] sm:$0xff]
  %v800 = vcombine.high %v798, %v798
  %802 = vrot.lane.b32.xlu0 %v798, 17
  %v803 = vpop.permute.xlu0 %802
  %804 = vrot.lane.b32.xlu0 %v800, 17
  %v805 = vpop.permute.xlu0 %804
  %v806 = vsel %vm49, %v803, %v805
  %v807 = vsel %vm49, %v805, %v803
  %v808 = vmul.f32 %v807, %v55
  %v809 = vmul.f32 %v806, %v59
  %810 = vrot.lane.b32.xlu0 %v798, 16
  %v811 = vpop.permute.xlu0 %810
  %812 = vrot.lane.b32.xlu0 %v800, 16
  %v813 = vpop.permute.xlu0 %812
  %v814 = vsel %vm66, %v811, %v813
  %v815 = vsel %vm66, %v813, %v811
  %v816 = vmul.f32 %v815, %v72
  %v817 = vmul.f32 %v814, %v76
  %818 = vrot.lane.b32.xlu0 %v798, 15
  %v819 = vpop.permute.xlu0 %818
  %820 = vrot.lane.b32.xlu0 %v800, 15
  %v821 = vpop.permute.xlu0 %820
  %v822 = vsel %vm83, %v819, %v821
  %v823 = vsel %vm83, %v821, %v819
  %v824 = vmul.f32 %v823, %v89
  %v825 = vmul.f32 %v822, %v93
  %v828 = vrot.slane %v816, 4
  %v829 = vrot.slane %v817, 4
  %v832 = vsel %vm102, %v808, %v828
  %v833 = vsel %vm102, %v809, %v829
  %834 = vrot.lane.b32.xlu0 %v798, 1
  %v835 = vpop.permute.xlu0 %834
  %836 = vrot.lane.b32.xlu0 %v800, 1
  %v837 = vpop.permute.xlu0 %836
  %v838 = vsel %vm109, %v835, %v837
  %v839 = vsel %vm109, %v837, %v835
  %v840 = vmul.f32 %v839, %v115
  %v841 = vmul.f32 %v838, %v119
  %842 = vrot.lane.b32.xlu0 %v798, 127
  %v843 = vpop.permute.xlu0 %842
  %844 = vrot.lane.b32.xlu0 %v800, 127
  %v845 = vpop.permute.xlu0 %844
  %v846 = vsel %vm126, %v843, %v845
  %v847 = vsel %vm126, %v845, %v843
  %v848 = vmul.f32 %v846, %v132
  %v849 = vmul.f32 %v847, %v136
  %v850 = vcombine.low %v798, %v798
  %v852 = vsel %vm102, %v840, %v850
  %v853 = vsel %vm102, %v841, %v798
  %v855 = vsel %vm102, %v848, 0
  %v858 = vsel %vm102, %v849, 0
  %860 = vmatprep.subr.mxu0 %v853
  %861 = vmatpush1.msra.mxu0 %v852
  %862 = vmatprep.subr.mxu0 %v858
  %863 = vmatpush1.msra.mxu0 %v855
  %864 = vmatprep.subr.mxu0 0.0
  %865 = vmatpush1.msra.mxu0 0.0
  %866 = vmatprep.subr.mxu0 0.0
  %867 = vmatpush1.msra.mxu0 0.0
  %868 = vmatprep.subr.mxu0 0.0
  %869 = vmatpush1.msra.mxu0 0.0
  %870 = vmatprep.subr.mxu0 0.0
  %871 = vmatpush1.msra.mxu0 0.0
  %872 = vmatprep.subr.mxu0 0.0
  %873 = vmatpush1.msra.mxu0 0.0
  %874 = vmatprep.subr.mxu0 0.0
  %875 = vmatpush1.msra.mxu0 0.0
  %876 = vmatprep.subr.mxu0 0.0
  %877 = vmatpush1.msra.mxu0 0.0
  %878 = vmatprep.subr.mxu0 0.0
  %879 = vmatpush1.msra.mxu0 0.0
  %880 = vmatprep.subr.mxu0 0.0
  %881 = vmatpush1.msra.mxu0 0.0
  %882 = vmatprep.subr.mxu0 0.0
  %883 = vmatpush1.msra.mxu0 0.0
  %884 = vmatprep.subr.mxu0 0.0
  %885 = vmatpush1.msra.mxu0 0.0
  %886 = vmatprep.subr.mxu0 0.0
  %887 = vmatpush1.msra.mxu0 0.0
  %888 = vmatprep.subr.mxu0 0.0
  %889 = vmatpush1.msra.mxu0 0.0
  %890 = vmatprep.subr.mxu0 0.0
  %891 = vmatpush1.msra.mxu0 0.0
  %892 = vmatprep.subr.mxu0 0.0
  %893 = vmatpush1.msra.mxu0 0.0
  %894 = vmatprep.subr.mxu0 0.0
  %895 = vmatpush1.msra.mxu0 0.0
  %896 = vmatprep.subr.mxu0 0.0
  %897 = vmatpush1.msra.mxu0 0.0
  %898 = vmatprep.subr.mxu0 0.0
  %899 = vmatpush1.msra.mxu0 0.0
  %900 = vmatprep.subr.mxu0 0.0
  %901 = vmatpush1.msra.mxu0 0.0
  %902 = vmatprep.subr.mxu0 0.0
  %903 = vmatpush1.msra.mxu0 0.0
  %904 = vmatprep.subr.mxu0 0.0
  %905 = vmatpush1.msra.mxu0 0.0
  %906 = vmatprep.subr.mxu0 0.0
  %907 = vmatpush1.msra.mxu0 0.0
  %908 = vmatprep.subr.mxu0 0.0
  %909 = vmatpush1.msra.mxu0 0.0
  %910 = vmatprep.subr.mxu0 0.0
  %911 = vmatpush1.msra.mxu0 0.0
  %912 = vmatprep.subr.mxu0 0.0
  %913 = vmatpush1.msra.mxu0 0.0
  %914 = vmatprep.subr.mxu0 0.0
  %915 = vmatpush1.msra.mxu0 0.0
  %916 = vmatprep.subr.mxu0 0.0
  %917 = vmatpush1.msra.mxu0 0.0
  %918 = vmatprep.subr.mxu0 0.0
  %919 = vmatpush1.msra.mxu0 0.0
  %920 = vmatprep.subr.mxu0 0.0
  %921 = vmatpush1.msra.mxu0 0.0
  %922 = vmatprep.subr.mxu0 0.0
  %923 = vmatpush1.msra.mxu0 0.0
  %924 = vmatprep.mubr.f32.mxu0 0.0
  %925 = vmatmul.mubr.f32.gmra.mrb[0].mxu0 %v145
  %v926 = vpop.f32.mrb[0].mxu0
  %v927 = vadd.f32 0.0, %v926
  %v928 = vpop.f32.mrb[0].mxu0
  %v929 = vadd.f32 0.0, %v928
  %930 = vdwg.mxu0
  %v932 = vsel %vm102, %v824, 0
  %v935 = vsel %vm102, %v825, 0
  %937 = vmatprep.subr.mxu0 %v833
  %938 = vmatpush1.msra.mxu0 %v832
  %939 = vmatprep.subr.mxu0 %v935
  %940 = vmatpush1.msra.mxu0 %v932
  %941 = vmatprep.subr.mxu0 0.0
  %942 = vmatpush1.msra.mxu0 0.0
  %943 = vmatprep.subr.mxu0 0.0
  %944 = vmatpush1.msra.mxu0 0.0
  %945 = vmatprep.subr.mxu0 0.0
  %946 = vmatpush1.msra.mxu0 0.0
  %947 = vmatprep.subr.mxu0 0.0
  %948 = vmatpush1.msra.mxu0 0.0
  %949 = vmatprep.subr.mxu0 0.0
  %950 = vmatpush1.msra.mxu0 0.0
  %951 = vmatprep.subr.mxu0 0.0
  %952 = vmatpush1.msra.mxu0 0.0
  %953 = vmatprep.subr.mxu0 0.0
  %954 = vmatpush1.msra.mxu0 0.0
  %955 = vmatprep.subr.mxu0 0.0
  %956 = vmatpush1.msra.mxu0 0.0
  %957 = vmatprep.subr.mxu0 0.0
  %958 = vmatpush1.msra.mxu0 0.0
  %959 = vmatprep.subr.mxu0 0.0
  %960 = vmatpush1.msra.mxu0 0.0
  %961 = vmatprep.subr.mxu0 0.0
  %962 = vmatpush1.msra.mxu0 0.0
  %963 = vmatprep.subr.mxu0 0.0
  %964 = vmatpush1.msra.mxu0 0.0
  %965 = vmatprep.subr.mxu0 0.0
  %966 = vmatpush1.msra.mxu0 0.0
  %967 = vmatprep.subr.mxu0 0.0
  %968 = vmatpush1.msra.mxu0 0.0
  %969 = vmatprep.subr.mxu0 0.0
  %970 = vmatpush1.msra.mxu0 0.0
  %971 = vmatprep.subr.mxu0 0.0
  %972 = vmatpush1.msra.mxu0 0.0
  %973 = vmatprep.subr.mxu0 0.0
  %974 = vmatpush1.msra.mxu0 0.0
  %975 = vmatprep.subr.mxu0 0.0
  %976 = vmatpush1.msra.mxu0 0.0
  %977 = vmatprep.subr.mxu0 0.0
  %978 = vmatpush1.msra.mxu0 0.0
  %979 = vmatprep.subr.mxu0 0.0
  %980 = vmatpush1.msra.mxu0 0.0
  %981 = vmatprep.subr.mxu0 0.0
  %982 = vmatpush1.msra.mxu0 0.0
  %983 = vmatprep.subr.mxu0 0.0
  %984 = vmatpush1.msra.mxu0 0.0
  %985 = vmatprep.subr.mxu0 0.0
  %986 = vmatpush1.msra.mxu0 0.0
  %987 = vmatprep.subr.mxu0 0.0
  %988 = vmatpush1.msra.mxu0 0.0
  %989 = vmatprep.subr.mxu0 0.0
  %990 = vmatpush1.msra.mxu0 0.0
  %991 = vmatprep.subr.mxu0 0.0
  %992 = vmatpush1.msra.mxu0 0.0
  %993 = vmatprep.subr.mxu0 0.0
  %994 = vmatpush1.msra.mxu0 0.0
  %995 = vmatprep.subr.mxu0 0.0
  %996 = vmatpush1.msra.mxu0 0.0
  %997 = vmatprep.subr.mxu0 0.0
  %998 = vmatpush1.msra.mxu0 0.0
  %999 = vmatprep.subr.mxu0 0.0
  %1000 = vmatpush1.msra.mxu0 0.0
  %1001 = vmatprep.mubr.f32.mxu0 0.0
  %1002 = vmatmul.mubr.f32.gmra.mrb[0].mxu0 %v225
  %v1003 = vpop.f32.mrb[0].mxu0
  %v1004 = vadd.f32 %v927, %v1003
  %v1005 = vpop.f32.mrb[0].mxu0
  %v1006 = vadd.f32 %v929, %v1005
  %1007 = vdwg.mxu0
  %1008 = vrot.lane.b32.xlu0 %v798, 113
  %v1009 = vpop.permute.xlu0 %1008
  %1010 = vrot.lane.b32.xlu0 %v800, 113
  %v1011 = vpop.permute.xlu0 %1010
  %v1012 = vsel %vm308, %v1009, %v1011
  %v1013 = vsel %vm308, %v1011, %v1009
  %v1014 = vmul.f32 %v1012, %v314
  %v1015 = vmul.f32 %v1013, %v318
  %1016 = vrot.lane.b32.xlu0 %v798, 112
  %v1017 = vpop.permute.xlu0 %1016
  %1018 = vrot.lane.b32.xlu0 %v800, 112
  %v1019 = vpop.permute.xlu0 %1018
  %v1020 = vsel %vm325, %v1017, %v1019
  %v1021 = vsel %vm325, %v1019, %v1017
  %v1022 = vmul.f32 %v1020, %v331
  %v1023 = vmul.f32 %v1021, %v335
  %1024 = vrot.lane.b32.xlu0 %v798, 111
  %v1025 = vpop.permute.xlu0 %1024
  %1026 = vrot.lane.b32.xlu0 %v800, 111
  %v1027 = vpop.permute.xlu0 %1026
  %v1028 = vsel %vm342, %v1025, %v1027
  %v1029 = vsel %vm342, %v1027, %v1025
  %v1030 = vmul.f32 %v1028, %v348
  %v1031 = vmul.f32 %v1029, %v352
  %v1034 = vrot.slane %v1022, 4
  %v1035 = vrot.slane %v1023, 4
  %v1038 = vsel %vm102, %v1014, %v1034
  %v1039 = vsel %vm102, %v1015, %v1035
  %v1041 = vsel %vm102, %v1030, 0
  %v1044 = vsel %vm102, %v1031, 0
  %1046 = vmatprep.subr.mxu0 %v1039
  %1047 = vmatpush1.msra.mxu0 %v1038
  %1048 = vmatprep.subr.mxu0 %v1044
  %1049 = vmatpush1.msra.mxu0 %v1041
  %1050 = vmatprep.subr.mxu0 0.0
  %1051 = vmatpush1.msra.mxu0 0.0
  %1052 = vmatprep.subr.mxu0 0.0
  %1053 = vmatpush1.msra.mxu0 0.0
  %1054 = vmatprep.subr.mxu0 0.0
  %1055 = vmatpush1.msra.mxu0 0.0
  %1056 = vmatprep.subr.mxu0 0.0
  %1057 = vmatpush1.msra.mxu0 0.0
  %1058 = vmatprep.subr.mxu0 0.0
  %1059 = vmatpush1.msra.mxu0 0.0
  %1060 = vmatprep.subr.mxu0 0.0
  %1061 = vmatpush1.msra.mxu0 0.0
  %1062 = vmatprep.subr.mxu0 0.0
  %1063 = vmatpush1.msra.mxu0 0.0
  %1064 = vmatprep.subr.mxu0 0.0
  %1065 = vmatpush1.msra.mxu0 0.0
  %1066 = vmatprep.subr.mxu0 0.0
  %1067 = vmatpush1.msra.mxu0 0.0
  %1068 = vmatprep.subr.mxu0 0.0
  %1069 = vmatpush1.msra.mxu0 0.0
  %1070 = vmatprep.subr.mxu0 0.0
  %1071 = vmatpush1.msra.mxu0 0.0
  %1072 = vmatprep.subr.mxu0 0.0
  %1073 = vmatpush1.msra.mxu0 0.0
  %1074 = vmatprep.subr.mxu0 0.0
  %1075 = vmatpush1.msra.mxu0 0.0
  %1076 = vmatprep.subr.mxu0 0.0
  %1077 = vmatpush1.msra.mxu0 0.0
  %1078 = vmatprep.subr.mxu0 0.0
  %1079 = vmatpush1.msra.mxu0 0.0
  %1080 = vmatprep.subr.mxu0 0.0
  %1081 = vmatpush1.msra.mxu0 0.0
  %1082 = vmatprep.subr.mxu0 0.0
  %1083 = vmatpush1.msra.mxu0 0.0
  %1084 = vmatprep.subr.mxu0 0.0
  %1085 = vmatpush1.msra.mxu0 0.0
  %1086 = vmatprep.subr.mxu0 0.0
  %1087 = vmatpush1.msra.mxu0 0.0
  %1088 = vmatprep.subr.mxu0 0.0
  %1089 = vmatpush1.msra.mxu0 0.0
  %1090 = vmatprep.subr.mxu0 0.0
  %1091 = vmatpush1.msra.mxu0 0.0
  %1092 = vmatprep.subr.mxu0 0.0
  %1093 = vmatpush1.msra.mxu0 0.0
  %1094 = vmatprep.subr.mxu0 0.0
  %1095 = vmatpush1.msra.mxu0 0.0
  %1096 = vmatprep.subr.mxu0 0.0
  %1097 = vmatpush1.msra.mxu0 0.0
  %1098 = vmatprep.subr.mxu0 0.0
  %1099 = vmatpush1.msra.mxu0 0.0
  %1100 = vmatprep.subr.mxu0 0.0
  %1101 = vmatpush1.msra.mxu0 0.0
  %1102 = vmatprep.subr.mxu0 0.0
  %1103 = vmatpush1.msra.mxu0 0.0
  %1104 = vmatprep.subr.mxu0 0.0
  %1105 = vmatpush1.msra.mxu0 0.0
  %1106 = vmatprep.subr.mxu0 0.0
  %1107 = vmatpush1.msra.mxu0 0.0
  %1108 = vmatprep.subr.mxu0 0.0
  %1109 = vmatpush1.msra.mxu0 0.0
  %1110 = vmatprep.mubr.f32.mxu0 0.0
  %1111 = vmatmul.mubr.f32.gmra.mrb[0].mxu0 %v364
  %v1112 = vpop.f32.mrb[0].mxu0
  %v1113 = vadd.f32 0.0, %v1112
  %v1114 = vpop.f32.mrb[0].mxu0
  %v1115 = vadd.f32 0.0, %v1114
  %1116 = vdwg.mxu0
  %v1117 = vadd.f32 %v1004, %v1113
  %v1118 = vadd.f32 %v1006, %v1115
  %v1119 = vadd.f32 %v1117, %v448
  %v1120 = vadd.f32 %v1118, %v448
  %v1121 = vmax.f32 %v1119, 0.0
  %v1122 = vmax.f32 %v1120, 0.0
  %1123 = vrot.lane.b32.xlu0 %v1121, 17
  %v1124 = vpop.permute.xlu0 %1123
  %1125 = vrot.lane.b32.xlu0 %v1122, 17
  %v1126 = vpop.permute.xlu0 %1125
  %v1127 = vsel %vm49, %v1124, %v1126
  %v1128 = vsel %vm49, %v1126, %v1124
  %v1129 = vmul.f32 %v1128, %v55
  %v1130 = vmul.f32 %v1127, %v59
  %1131 = vrot.lane.b32.xlu0 %v1121, 16
  %v1132 = vpop.permute.xlu0 %1131
  %1133 = vrot.lane.b32.xlu0 %v1122, 16
  %v1134 = vpop.permute.xlu0 %1133
  %v1135 = vsel %vm66, %v1132, %v1134
  %v1136 = vsel %vm66, %v1134, %v1132
  %v1137 = vmul.f32 %v1136, %v72
  %v1138 = vmul.f32 %v1135, %v76
  %1139 = vrot.lane.b32.xlu0 %v1121, 15
  %v1140 = vpop.permute.xlu0 %1139
  %1141 = vrot.lane.b32.xlu0 %v1122, 15
  %v1142 = vpop.permute.xlu0 %1141
  %v1143 = vsel %vm83, %v1140, %v1142
  %v1144 = vsel %vm83, %v1142, %v1140
  %v1145 = vmul.f32 %v1144, %v89
  %v1146 = vmul.f32 %v1143, %v93
  %v1149 = vrot.slane %v1137, 4
  %v1150 = vrot.slane %v1138, 4
  %v1153 = vsel %vm102, %v1129, %v1149
  %v1154 = vsel %vm102, %v1130, %v1150
  %1155 = vrot.lane.b32.xlu0 %v1121, 1
  %v1156 = vpop.permute.xlu0 %1155
  %1157 = vrot.lane.b32.xlu0 %v1122, 1
  %v1158 = vpop.permute.xlu0 %1157
  %v1159 = vsel %vm109, %v1156, %v1158
  %v1160 = vsel %vm109, %v1158, %v1156
  %v1161 = vmul.f32 %v1160, %v115
  %v1162 = vmul.f32 %v1159, %v119
  %1163 = vrot.lane.b32.xlu0 %v1121, 127
  %v1164 = vpop.permute.xlu0 %1163
  %1165 = vrot.lane.b32.xlu0 %v1122, 127
  %v1166 = vpop.permute.xlu0 %1165
  %v1167 = vsel %vm126, %v1164, %v1166
  %v1168 = vsel %vm126, %v1166, %v1164
  %v1169 = vmul.f32 %v1167, %v132
  %v1170 = vmul.f32 %v1168, %v136
  %v1173 = vrot.slane %v1121, 4
  %v1174 = vrot.slane %v1122, 4
  %v1177 = vsel %vm102, %v1161, %v1173
  %v1178 = vsel %vm102, %v1162, %v1174
  %v1180 = vsel %vm102, %v1169, 0
  %v1183 = vsel %vm102, %v1170, 0
  %1185 = vmatprep.subr.mxu0 %v1178
  %1186 = vmatpush1.msra.mxu0 %v1177
  %1187 = vmatprep.subr.mxu0 %v1183
  %1188 = vmatpush1.msra.mxu0 %v1180
  %1189 = vmatprep.subr.mxu0 0.0
  %1190 = vmatpush1.msra.mxu0 0.0
  %1191 = vmatprep.subr.mxu0 0.0
  %1192 = vmatpush1.msra.mxu0 0.0
  %1193 = vmatprep.subr.mxu0 0.0
  %1194 = vmatpush1.msra.mxu0 0.0
  %1195 = vmatprep.subr.mxu0 0.0
  %1196 = vmatpush1.msra.mxu0 0.0
  %1197 = vmatprep.subr.mxu0 0.0
  %1198 = vmatpush1.msra.mxu0 0.0
  %1199 = vmatprep.subr.mxu0 0.0
  %1200 = vmatpush1.msra.mxu0 0.0
  %1201 = vmatprep.subr.mxu0 0.0
  %1202 = vmatpush1.msra.mxu0 0.0
  %1203 = vmatprep.subr.mxu0 0.0
  %1204 = vmatpush1.msra.mxu0 0.0
  %1205 = vmatprep.subr.mxu0 0.0
  %1206 = vmatpush1.msra.mxu0 0.0
  %1207 = vmatprep.subr.mxu0 0.0
  %1208 = vmatpush1.msra.mxu0 0.0
  %1209 = vmatprep.subr.mxu0 0.0
  %1210 = vmatpush1.msra.mxu0 0.0
  %1211 = vmatprep.subr.mxu0 0.0
  %1212 = vmatpush1.msra.mxu0 0.0
  %1213 = vmatprep.subr.mxu0 0.0
  %1214 = vmatpush1.msra.mxu0 0.0
  %1215 = vmatprep.subr.mxu0 0.0
  %1216 = vmatpush1.msra.mxu0 0.0
  %1217 = vmatprep.subr.mxu0 0.0
  %1218 = vmatpush1.msra.mxu0 0.0
  %1219 = vmatprep.subr.mxu0 0.0
  %1220 = vmatpush1.msra.mxu0 0.0
  %1221 = vmatprep.subr.mxu0 0.0
  %1222 = vmatpush1.msra.mxu0 0.0
  %1223 = vmatprep.subr.mxu0 0.0
  %1224 = vmatpush1.msra.mxu0 0.0
  %1225 = vmatprep.subr.mxu0 0.0
  %1226 = vmatpush1.msra.mxu0 0.0
  %1227 = vmatprep.subr.mxu0 0.0
  %1228 = vmatpush1.msra.mxu0 0.0
  %1229 = vmatprep.subr.mxu0 0.0
  %1230 = vmatpush1.msra.mxu0 0.0
  %1231 = vmatprep.subr.mxu0 0.0
  %1232 = vmatpush1.msra.mxu0 0.0
  %1233 = vmatprep.subr.mxu0 0.0
  %1234 = vmatpush1.msra.mxu0 0.0
  %1235 = vmatprep.subr.mxu0 0.0
  %1236 = vmatpush1.msra.mxu0 0.0
  %1237 = vmatprep.subr.mxu0 0.0
  %1238 = vmatpush1.msra.mxu0 0.0
  %1239 = vmatprep.subr.mxu0 0.0
  %1240 = vmatpush1.msra.mxu0 0.0
  %1241 = vmatprep.subr.mxu0 0.0
  %1242 = vmatpush1.msra.mxu0 0.0
  %1243 = vmatprep.subr.mxu0 0.0
  %1244 = vmatpush1.msra.mxu0 0.0
  %1245 = vmatprep.subr.mxu0 0.0
  %1246 = vmatpush1.msra.mxu0 0.0
  %1247 = vmatprep.subr.mxu0 0.0
  %1248 = vmatpush1.msra.mxu0 0.0
  %1249 = vmatprep.mubr.f32.mxu0 0.0
  %1250 = vmatmul.mubr.f32.gmra.mrb[0].mxu0 %v511
  %v1251 = vpop.f32.mrb[0].mxu0
  %v1252 = vadd.f32 0.0, %v1251
  %v1253 = vpop.f32.mrb[0].mxu0
  %v1254 = vadd.f32 0.0, %v1253
  %1255 = vdwg.mxu0
  %v1257 = vsel %vm102, %v1145, 0
  %v1260 = vsel %vm102, %v1146, 0
  %1262 = vmatprep.subr.mxu0 %v1154
  %1263 = vmatpush1.msra.mxu0 %v1153
  %1264 = vmatprep.subr.mxu0 %v1260
  %1265 = vmatpush1.msra.mxu0 %v1257
  %1266 = vmatprep.subr.mxu0 0.0
  %1267 = vmatpush1.msra.mxu0 0.0
  %1268 = vmatprep.subr.mxu0 0.0
  %1269 = vmatpush1.msra.mxu0 0.0
  %1270 = vmatprep.subr.mxu0 0.0
  %1271 = vmatpush1.msra.mxu0 0.0
  %1272 = vmatprep.subr.mxu0 0.0
  %1273 = vmatpush1.msra.mxu0 0.0
  %1274 = vmatprep.subr.mxu0 0.0
  %1275 = vmatpush1.msra.mxu0 0.0
  %1276 = vmatprep.subr.mxu0 0.0
  %1277 = vmatpush1.msra.mxu0 0.0
  %1278 = vmatprep.subr.mxu0 0.0
  %1279 = vmatpush1.msra.mxu0 0.0
  %1280 = vmatprep.subr.mxu0 0.0
  %1281 = vmatpush1.msra.mxu0 0.0
  %1282 = vmatprep.subr.mxu0 0.0
  %1283 = vmatpush1.msra.mxu0 0.0
  %1284 = vmatprep.subr.mxu0 0.0
  %1285 = vmatpush1.msra.mxu0 0.0
  %1286 = vmatprep.subr.mxu0 0.0
  %1287 = vmatpush1.msra.mxu0 0.0
  %1288 = vmatprep.subr.mxu0 0.0
  %1289 = vmatpush1.msra.mxu0 0.0
  %1290 = vmatprep.subr.mxu0 0.0
  %1291 = vmatpush1.msra.mxu0 0.0
  %1292 = vmatprep.subr.mxu0 0.0
  %1293 = vmatpush1.msra.mxu0 0.0
  %1294 = vmatprep.subr.mxu0 0.0
  %1295 = vmatpush1.msra.mxu0 0.0
  %1296 = vmatprep.subr.mxu0 0.0
  %1297 = vmatpush1.msra.mxu0 0.0
  %1298 = vmatprep.subr.mxu0 0.0
  %1299 = vmatpush1.msra.mxu0 0.0
  %1300 = vmatprep.subr.mxu0 0.0
  %1301 = vmatpush1.msra.mxu0 0.0
  %1302 = vmatprep.subr.mxu0 0.0
  %1303 = vmatpush1.msra.mxu0 0.0
  %1304 = vmatprep.subr.mxu0 0.0
  %1305 = vmatpush1.msra.mxu0 0.0
  %1306 = vmatprep.subr.mxu0 0.0
  %1307 = vmatpush1.msra.mxu0 0.0
  %1308 = vmatprep.subr.mxu0 0.0
  %1309 = vmatpush1.msra.mxu0 0.0
  %1310 = vmatprep.subr.mxu0 0.0
  %1311 = vmatpush1.msra.mxu0 0.0
  %1312 = vmatprep.subr.mxu0 0.0
  %1313 = vmatpush1.msra.mxu0 0.0
  %1314 = vmatprep.subr.mxu0 0.0
  %1315 = vmatpush1.msra.mxu0 0.0
  %1316 = vmatprep.subr.mxu0 0.0
  %1317 = vmatpush1.msra.mxu0 0.0
  %1318 = vmatprep.subr.mxu0 0.0
  %1319 = vmatpush1.msra.mxu0 0.0
  %1320 = vmatprep.subr.mxu0 0.0
  %1321 = vmatpush1.msra.mxu0 0.0
  %1322 = vmatprep.subr.mxu0 0.0
  %1323 = vmatpush1.msra.mxu0 0.0
  %1324 = vmatprep.subr.mxu0 0.0
  %1325 = vmatpush1.msra.mxu0 0.0
  %1326 = vmatprep.mubr.f32.mxu0 0.0
  %1327 = vmatmul.mubr.f32.gmra.mrb[0].mxu0 %v591
  %v1328 = vpop.f32.mrb[0].mxu0
  %v1329 = vadd.f32 %v1252, %v1328
  %v1330 = vpop.f32.mrb[0].mxu0
  %v1331 = vadd.f32 %v1254, %v1330
  %1332 = vdwg.mxu0
  %1333 = vrot.lane.b32.xlu0 %v1121, 113
  %v1334 = vpop.permute.xlu0 %1333
  %1335 = vrot.lane.b32.xlu0 %v1122, 113
  %v1336 = vpop.permute.xlu0 %1335
  %v1337 = vsel %vm308, %v1334, %v1336
  %v1338 = vsel %vm308, %v1336, %v1334
  %v1339 = vmul.f32 %v1337, %v314
  %v1340 = vmul.f32 %v1338, %v318
  %1341 = vrot.lane.b32.xlu0 %v1121, 112
  %v1342 = vpop.permute.xlu0 %1341
  %1343 = vrot.lane.b32.xlu0 %v1122, 112
  %v1344 = vpop.permute.xlu0 %1343
  %v1345 = vsel %vm325, %v1342, %v1344
  %v1346 = vsel %vm325, %v1344, %v1342
  %v1347 = vmul.f32 %v1345, %v331
  %v1348 = vmul.f32 %v1346, %v335
  %1349 = vrot.lane.b32.xlu0 %v1121, 111
  %v1350 = vpop.permute.xlu0 %1349
  %1351 = vrot.lane.b32.xlu0 %v1122, 111
  %v1352 = vpop.permute.xlu0 %1351
  %v1353 = vsel %vm342, %v1350, %v1352
  %v1354 = vsel %vm342, %v1352, %v1350
  %v1355 = vmul.f32 %v1353, %v348
  %v1356 = vmul.f32 %v1354, %v352
  %v1359 = vrot.slane %v1347, 4
  %v1360 = vrot.slane %v1348, 4
  %v1363 = vsel %vm102, %v1339, %v1359
  %v1364 = vsel %vm102, %v1340, %v1360
  %v1366 = vsel %vm102, %v1355, 0
  %v1369 = vsel %vm102, %v1356, 0
  %1371 = vmatprep.subr.mxu0 %v1364
  %1372 = vmatpush1.msra.mxu0 %v1363
  %1373 = vmatprep.subr.mxu0 %v1369
  %1374 = vmatpush1.msra.mxu0 %v1366
  %1375 = vmatprep.subr.mxu0 0.0
  %1376 = vmatpush1.msra.mxu0 0.0
  %1377 = vmatprep.subr.mxu0 0.0
  %1378 = vmatpush1.msra.mxu0 0.0
  %1379 = vmatprep.subr.mxu0 0.0
  %1380 = vmatpush1.msra.mxu0 0.0
  %1381 = vmatprep.subr.mxu0 0.0
  %1382 = vmatpush1.msra.mxu0 0.0
  %1383 = vmatprep.subr.mxu0 0.0
  %1384 = vmatpush1.msra.mxu0 0.0
  %1385 = vmatprep.subr.mxu0 0.0
  %1386 = vmatpush1.msra.mxu0 0.0
  %1387 = vmatprep.subr.mxu0 0.0
  %1388 = vmatpush1.msra.mxu0 0.0
  %1389 = vmatprep.subr.mxu0 0.0
  %1390 = vmatpush1.msra.mxu0 0.0
  %1391 = vmatprep.subr.mxu0 0.0
  %1392 = vmatpush1.msra.mxu0 0.0
  %1393 = vmatprep.subr.mxu0 0.0
  %1394 = vmatpush1.msra.mxu0 0.0
  %1395 = vmatprep.subr.mxu0 0.0
  %1396 = vmatpush1.msra.mxu0 0.0
  %1397 = vmatprep.subr.mxu0 0.0
  %1398 = vmatpush1.msra.mxu0 0.0
  %1399 = vmatprep.subr.mxu0 0.0
  %1400 = vmatpush1.msra.mxu0 0.0
  %1401 = vmatprep.subr.mxu0 0.0
  %1402 = vmatpush1.msra.mxu0 0.0
  %1403 = vmatprep.subr.mxu0 0.0
  %1404 = vmatpush1.msra.mxu0 0.0
  %1405 = vmatprep.subr.mxu0 0.0
  %1406 = vmatpush1.msra.mxu0 0.0
  %1407 = vmatprep.subr.mxu0 0.0
  %1408 = vmatpush1.msra.mxu0 0.0
  %1409 = vmatprep.subr.mxu0 0.0
  %1410 = vmatpush1.msra.mxu0 0.0
  %1411 = vmatprep.subr.mxu0 0.0
  %1412 = vmatpush1.msra.mxu0 0.0
  %1413 = vmatprep.subr.mxu0 0.0
  %1414 = vmatpush1.msra.mxu0 0.0
  %1415 = vmatprep.subr.mxu0 0.0
  %1416 = vmatpush1.msra.mxu0 0.0
  %1417 = vmatprep.subr.mxu0 0.0
  %1418 = vmatpush1.msra.mxu0 0.0
  %1419 = vmatprep.subr.mxu0 0.0
  %1420 = vmatpush1.msra.mxu0 0.0
  %1421 = vmatprep.subr.mxu0 0.0
  %1422 = vmatpush1.msra.mxu0 0.0
  %1423 = vmatprep.subr.mxu0 0.0
  %1424 = vmatpush1.msra.mxu0 0.0
  %1425 = vmatprep.subr.mxu0 0.0
  %1426 = vmatpush1.msra.mxu0 0.0
  %1427 = vmatprep.subr.mxu0 0.0
  %1428 = vmatpush1.msra.mxu0 0.0
  %1429 = vmatprep.subr.mxu0 0.0
  %1430 = vmatpush1.msra.mxu0 0.0
  %1431 = vmatprep.subr.mxu0 0.0
  %1432 = vmatpush1.msra.mxu0 0.0
  %1433 = vmatprep.subr.mxu0 0.0
  %1434 = vmatpush1.msra.mxu0 0.0
  %1435 = vmatprep.mubr.f32.mxu0 0.0
  %1436 = vmatmul.mubr.f32.gmra.mrb[0].mxu0 %v703
  %v1437 = vpop.f32.mrb[0].mxu0
  %v1438 = vadd.f32 0.0, %v1437
  %v1439 = vpop.f32.mrb[0].mxu0
  %v1440 = vadd.f32 0.0, %v1439
  %1441 = vdwg.mxu0
  %v1442 = vadd.f32 %v1329, %v1438
  %v1443 = vadd.f32 %v1331, %v1440
  %v1444 = vadd.f32 %v1442, %v787
  %v1445 = vadd.f32 %v1443, %v787
  %v1448 = vcombine.low %v1444, %v1445
  %v1450 = vadd.f32 %v798, %v1448
  %s1451 = scalar_lea.vmem %s6, 8
  %1452 = vst [vmem:[%s1451] sm:$0xff] %v1450
  // Predicated region
  $region26: #{resblock_pallas.1} parent=0 // pred_check
    _
  $region27: #{resblock_pallas.1} parent=0 // pred_check_branch
    %1454 = sbr.rel (0) target = $region29
  $region28: #{resblock_pallas.1} parent=0 // pred_region
    _
  $region29: #{resblock_pallas.1} parent=0 // pred_fallthru
    _
  // Predicated region
  $region30: #{resblock_pallas.1} parent=0 // pred_check
    _
  $region31: #{resblock_pallas.1} parent=0 // pred_check_branch
    %1456 = sbr.rel (0) target = $region33
  $region32: #{resblock_pallas.1} parent=0 // pred_region
    _
  $region33: #{resblock_pallas.1} parent=0 // pred_fallthru
    _

</llo_original>
